<compile_context>
chip_gen: v5e
topology: v5e:2x2
jax: 0.10.0
libtpu: 0.0.40
codegen_flags: <defaults>
</compile_context>

<pallas_src>
import jax
import jax.numpy as jnp
from jax.experimental import pallas as pl
from jax.experimental.pallas import tpu as pltpu

# Layer dims of the stacked autoencoder (encoder then decoder).
LAYER_DIMS = [784, 256, 128, 64, 32, 16, 32, 64, 128, 256, 784]
NUM_LAYERS = len(LAYER_DIMS) - 1  # 10 linear layers
IN_DIM = LAYER_DIMS[0]
OUT_DIM = LAYER_DIMS[-1]
BIAS_W = max(LAYER_DIMS[1:])      # 784: lane width of the packed bias slab


def _round_up(x, m):
    return ((x + m - 1) // m) * m


def _sae_kernel(x_ref, *refs):
    """Fused forward: 10 x (bf16 matmul -> f32 acc -> +bias -> ReLU)."""
    w_refs = refs[:NUM_LAYERS]          # bf16 weights, resident across grid steps
    b_ref = refs[NUM_LAYERS]            # (NUM_LAYERS, BIAS_W) f32 bias slab
    out_ref = refs[NUM_LAYERS + 1]      # (TB, 784) f32 output tile

    # x arrives as raw f32; cast to bf16 on the VPU (hidden under the DMA).
    h = x_ref[...].astype(jnp.bfloat16)           # (TB, 784) bf16
    for i, w_ref in enumerate(w_refs):
        out_dim = w_ref.shape[1]
        acc = jnp.dot(h, w_ref[...], preferred_element_type=jnp.float32)
        acc = acc + b_ref[i:i + 1, :out_dim]      # f32 bias, broadcasts over rows
        act = jnp.maximum(acc, 0.0)               # ReLU in f32
        if i < NUM_LAYERS - 1:
            h = act.astype(jnp.bfloat16)          # bf16 activations between layers
        else:
            h = act                               # final layer stays f32
    out_ref[...] = h.astype(out_ref.dtype)


def prepare_params(weights, biases):
    """One-time parameter prep (hoisted out of the per-call path).

    weights[i]: (in_i, out_i) f32  ->  bf16
    biases[i]:  (out_i,)      f32  ->  packed into one (NUM_LAYERS, 784) f32 slab
    """
    w_prep = tuple(w.astype(jnp.bfloat16) for w in weights)
    bias_slab = jnp.stack(
        [jnp.pad(b.astype(jnp.float32), (0, BIAS_W - b.shape[0])) for b in biases]
    )
    return w_prep, bias_slab


def _pick_tb(B, tb_max):
    """Batch tile: multiple of 16 (bf16 packing), >=2 grid steps when possible."""
    half = -(-B // 2)                                   # cdiv(B, 2)
    tb = min(tb_max, _round_up(half, 16), _round_up(B, 8))
    return max(tb, 8)


def _vmem_limit_bytes(TB):
    """Right-size the scoped VMEM budget; cap at 48 MiB for v7x safety."""
    w_bytes = 2 * 2 * sum(LAYER_DIMS[i] * LAYER_DIMS[i + 1]
                          for i in range(NUM_LAYERS))       # bf16, 2 pipeline bufs
    b_bytes = 2 * NUM_LAYERS * BIAS_W * 4
    io_bytes = 2 * TB * IN_DIM * 4 + 2 * TB * OUT_DIM * 4   # x + out f32 tiles, 2 bufs
    live = TB * (IN_DIM * 2 + 4 * LAYER_DIMS[1] * 4)        # bf16 h + f32 acc headroom
    est = w_bytes + b_bytes + io_bytes + live + (8 << 20)
    return max(32 << 20, min(est, 48 << 20))


def stacked_autoencoder_forward(x, w_prep, bias_slab, *, tb_max=1024):
    """x: (B, 784) f32. w_prep/bias_slab from prepare_params().

    tb_max: sweepable batch tile. 1024 is safe on all chips; v5e/v6e (128 MiB
    VMEM) can go to 2048.
    """
    B, D = x.shape
    assert D == IN_DIM

    TB = _pick_tb(B, tb_max)
    grid = (pl.cdiv(B, TB),)   # partial last tile handled by Pallas (masked store)

    in_specs = [pl.BlockSpec((TB, D), lambda i: (i, 0))]                   # x tile
    in_specs += [pl.BlockSpec(w.shape, lambda i: (0, 0)) for w in w_prep]  # resident
    in_specs += [pl.BlockSpec(bias_slab.shape, lambda i: (0, 0))]          # resident
    # 784 == full array width, so a (TB, 784) block is legal; 6 of 7 lane
    # groups per row store unmasked — far cheaper than a separate unpad pass.
    out_specs = pl.BlockSpec((TB, OUT_DIM), lambda i: (i, 0))
    out_shape = jax.ShapeDtypeStruct((B, OUT_DIM), jnp.float32)

    return pl.pallas_call(
        _sae_kernel,
        grid=grid,
        in_specs=in_specs,
        out_specs=out_specs,
        out_shape=out_shape,
        compiler_params=pltpu.CompilerParams(
            dimension_semantics=("parallel",),   # megacore on v7x; no-op on v5e/v6e
            vmem_limit_bytes=_vmem_limit_bytes(TB),
        ),
    )(x, *w_prep, bias_slab)


def init_params(key):
    """Deterministic init mimicking nn.Linear's U(-1/sqrt(fan_in), 1/sqrt(fan_in))."""
    weights, biases = [], []
    for i in range(NUM_LAYERS):
        fan_in, fan_out = LAYER_DIMS[i], LAYER_DIMS[i + 1]
        key, kw, kb = jax.random.split(key, 3)
        bound = 1.0 / (fan_in ** 0.5)
        # Stored as (in, out) == W_pt.T
        w = jax.random.uniform(kw, (fan_in, fan_out), jnp.float32, -bound, bound)
        b = jax.random.uniform(kb, (fan_out,), jnp.float32, -bound, bound)
        weights.append(w)
        biases.append(b)
    return weights, biases


def reference_forward(x, weights, biases):
    """Pure-JAX reference following the same bf16/f32 compute path as the kernel."""
    h = x.astype(jnp.bfloat16)
    for i in range(NUM_LAYERS):
        acc = jnp.dot(h, weights[i].astype(jnp.bfloat16),
                      preferred_element_type=jnp.float32)
        acc = acc + biases[i].astype(jnp.float32)
        act = jnp.maximum(acc, 0.0)
        h = act.astype(jnp.bfloat16) if i < NUM_LAYERS - 1 else act
    return h


if __name__ == "__main__":
    key = jax.random.PRNGKey(0)
    key, kx1, kx2 = jax.random.split(key, 3)
    weights, biases = init_params(key)
    w_prep, bias_slab = prepare_params(weights, biases)   # one-time prep

    # Case 1: tiny batch, single grid step.
    B1 = 8
    x1 = jax.random.normal(kx1, (B1, 784), jnp.float32)
    out1 = jax.block_until_ready(stacked_autoencoder_forward(x1, w_prep, bias_slab))
    ref1 = reference_forward(x1, weights, biases)
    assert out1.shape == (B1, 784)
    assert jnp.allclose(out1, ref1, atol=2e-2, rtol=2e-2), "mismatch vs reference (B=8)"

    # Case 2: non-multiple batch with a small tile -> multi-step grid + masked
    # partial tail (no wrapper-side padding or slicing).
    B2 = 20
    x2 = jax.random.normal(kx2, (B2, 784), jnp.float32)
    out2 = jax.block_until_ready(
        stacked_autoencoder_forward(x2, w_prep, bias_slab, tb_max=16))
    ref2 = reference_forward(x2, weights, biases)
    assert out2.shape == (B2, 784)
    assert jnp.allclose(out2, ref2, atol=2e-2, rtol=2e-2), "mismatch vs reference (B=20)"

    print("KERNEL_OK")
</pallas_src>

<mosaic_0001>
module attributes {stable_mosaic.version = 11 : i64} {
  func.func @_sae_kernel(%arg0: i32, %arg1: memref<8x784xf32, #tpu.memory_space<vmem>>, %arg2: memref<784x256xbf16, #tpu.memory_space<vmem>>, %arg3: memref<256x128xbf16, #tpu.memory_space<vmem>>, %arg4: memref<128x64xbf16, #tpu.memory_space<vmem>>, %arg5: memref<64x32xbf16, #tpu.memory_space<vmem>>, %arg6: memref<32x16xbf16, #tpu.memory_space<vmem>>, %arg7: memref<16x32xbf16, #tpu.memory_space<vmem>>, %arg8: memref<32x64xbf16, #tpu.memory_space<vmem>>, %arg9: memref<64x128xbf16, #tpu.memory_space<vmem>>, %arg10: memref<128x256xbf16, #tpu.memory_space<vmem>>, %arg11: memref<256x784xbf16, #tpu.memory_space<vmem>>, %arg12: memref<10x784xf32, #tpu.memory_space<vmem>>, %arg13: memref<8x784xf32, #tpu.memory_space<vmem>>) attributes {dimension_semantics = [#tpu.dimension_semantics<parallel>], iteration_bounds = array<i64: 1>, scalar_prefetch = 0 : i64, scratch_operands = 0 : i64, tpu.core_type = #tpu.core_type<tc>, window_params = [{transform_indices = @transform_0, window_bounds = array<i64: 8, 784>}, {pipeline_mode = #tpu.pipeline_mode<synchronous>, transform_indices = @transform_1, window_bounds = array<i64: 784, 256>}, {pipeline_mode = #tpu.pipeline_mode<synchronous>, transform_indices = @transform_2, window_bounds = array<i64: 256, 128>}, {pipeline_mode = #tpu.pipeline_mode<synchronous>, transform_indices = @transform_3, window_bounds = array<i64: 128, 64>}, {pipeline_mode = #tpu.pipeline_mode<synchronous>, transform_indices = @transform_4, window_bounds = array<i64: 64, 32>}, {pipeline_mode = #tpu.pipeline_mode<synchronous>, transform_indices = @transform_5, window_bounds = array<i64: 32, 16>}, {pipeline_mode = #tpu.pipeline_mode<synchronous>, transform_indices = @transform_6, window_bounds = array<i64: 16, 32>}, {pipeline_mode = #tpu.pipeline_mode<synchronous>, transform_indices = @transform_7, window_bounds = array<i64: 32, 64>}, {pipeline_mode = #tpu.pipeline_mode<synchronous>, transform_indices = @transform_8, window_bounds = array<i64: 64, 128>}, {pipeline_mode = #tpu.pipeline_mode<synchronous>, transform_indices = @transform_9, window_bounds = array<i64: 128, 256>}, {pipeline_mode = #tpu.pipeline_mode<synchronous>, transform_indices = @transform_10, window_bounds = array<i64: 256, 784>}, {pipeline_mode = #tpu.pipeline_mode<synchronous>, transform_indices = @transform_11, window_bounds = array<i64: 10, 784>}, {transform_indices = @transform_12, window_bounds = array<i64: 8, 784>}]} {
    %c0 = arith.constant 0 : index
    %c0_0 = arith.constant 0 : index
    %0 = vector.load %arg1[%c0, %c0_0] : memref<8x784xf32, #tpu.memory_space<vmem>>, vector<8x784xf32>
    %1 = arith.truncf %0 : vector<8x784xf32> to vector<8x784xbf16>
    %c0_1 = arith.constant 0 : index
    %c0_2 = arith.constant 0 : index
    %2 = vector.load %arg2[%c0_1, %c0_2] : memref<784x256xbf16, #tpu.memory_space<vmem>>, vector<784x256xbf16>
    %cst = arith.constant dense<0.000000e+00> : vector<8x256xf32>
    %3 = tpu.matmul %1, %2, %cst {dimension_numbers = #tpu.dot_dimension_numbers<[1], [0], [0], [1], [0, 0, 1, 1], [], []>} : vector<8x784xbf16>, vector<784x256xbf16>, vector<8x256xf32> -> vector<8x256xf32>
    %c0_3 = arith.constant 0 : index
    %c0_4 = arith.constant 0 : index
    %4 = vector.load %arg12[%c0_3, %c0_4] : memref<10x784xf32, #tpu.memory_space<vmem>>, vector<1x256xf32>
    %5 = vector.broadcast %4 : vector<1x256xf32> to vector<8x256xf32>
    %6 = arith.addf %3, %5 : vector<8x256xf32>
    %cst_5 = arith.constant 0.000000e+00 : f32
    %7 = vector.broadcast %cst_5 : f32 to vector<8x256xf32>
    %8 = arith.maximumf %6, %7 : vector<8x256xf32>
    %9 = arith.truncf %8 : vector<8x256xf32> to vector<8x256xbf16>
    %c0_6 = arith.constant 0 : index
    %c0_7 = arith.constant 0 : index
    %10 = vector.load %arg3[%c0_6, %c0_7] : memref<256x128xbf16, #tpu.memory_space<vmem>>, vector<256x128xbf16>
    %cst_8 = arith.constant dense<0.000000e+00> : vector<8x128xf32>
    %11 = tpu.matmul %9, %10, %cst_8 {dimension_numbers = #tpu.dot_dimension_numbers<[1], [0], [0], [1], [0, 0, 1, 1], [], []>} : vector<8x256xbf16>, vector<256x128xbf16>, vector<8x128xf32> -> vector<8x128xf32>
    %c1 = arith.constant 1 : index
    %c0_9 = arith.constant 0 : index
    %12 = vector.load %arg12[%c1, %c0_9] : memref<10x784xf32, #tpu.memory_space<vmem>>, vector<1x128xf32>
    %13 = vector.broadcast %12 : vector<1x128xf32> to vector<8x128xf32>
    %14 = arith.addf %11, %13 : vector<8x128xf32>
    %cst_10 = arith.constant 0.000000e+00 : f32
    %15 = vector.broadcast %cst_10 : f32 to vector<8x128xf32>
    %16 = arith.maximumf %14, %15 : vector<8x128xf32>
    %17 = arith.truncf %16 : vector<8x128xf32> to vector<8x128xbf16>
    %c0_11 = arith.constant 0 : index
    %c0_12 = arith.constant 0 : index
    %18 = vector.load %arg4[%c0_11, %c0_12] : memref<128x64xbf16, #tpu.memory_space<vmem>>, vector<128x64xbf16>
    %cst_13 = arith.constant dense<0.000000e+00> : vector<8x64xf32>
    %19 = tpu.matmul %17, %18, %cst_13 {dimension_numbers = #tpu.dot_dimension_numbers<[1], [0], [0], [1], [0, 0, 1, 1], [], []>} : vector<8x128xbf16>, vector<128x64xbf16>, vector<8x64xf32> -> vector<8x64xf32>
    %c2 = arith.constant 2 : index
    %c0_14 = arith.constant 0 : index
    %20 = vector.load %arg12[%c2, %c0_14] : memref<10x784xf32, #tpu.memory_space<vmem>>, vector<1x64xf32>
    %21 = vector.broadcast %20 : vector<1x64xf32> to vector<8x64xf32>
    %22 = arith.addf %19, %21 : vector<8x64xf32>
    %cst_15 = arith.constant 0.000000e+00 : f32
    %23 = vector.broadcast %cst_15 : f32 to vector<8x64xf32>
    %24 = arith.maximumf %22, %23 : vector<8x64xf32>
    %25 = arith.truncf %24 : vector<8x64xf32> to vector<8x64xbf16>
    %c0_16 = arith.constant 0 : index
    %c0_17 = arith.constant 0 : index
    %26 = vector.load %arg5[%c0_16, %c0_17] : memref<64x32xbf16, #tpu.memory_space<vmem>>, vector<64x32xbf16>
    %cst_18 = arith.constant dense<0.000000e+00> : vector<8x32xf32>
    %27 = tpu.matmul %25, %26, %cst_18 {dimension_numbers = #tpu.dot_dimension_numbers<[1], [0], [0], [1], [0, 0, 1, 1], [], []>} : vector<8x64xbf16>, vector<64x32xbf16>, vector<8x32xf32> -> vector<8x32xf32>
    %c3 = arith.constant 3 : index
    %c0_19 = arith.constant 0 : index
    %28 = vector.load %arg12[%c3, %c0_19] : memref<10x784xf32, #tpu.memory_space<vmem>>, vector<1x32xf32>
    %29 = vector.broadcast %28 : vector<1x32xf32> to vector<8x32xf32>
    %30 = arith.addf %27, %29 : vector<8x32xf32>
    %cst_20 = arith.constant 0.000000e+00 : f32
    %31 = vector.broadcast %cst_20 : f32 to vector<8x32xf32>
    %32 = arith.maximumf %30, %31 : vector<8x32xf32>
    %33 = arith.truncf %32 : vector<8x32xf32> to vector<8x32xbf16>
    %c0_21 = arith.constant 0 : index
    %c0_22 = arith.constant 0 : index
    %34 = vector.load %arg6[%c0_21, %c0_22] : memref<32x16xbf16, #tpu.memory_space<vmem>>, vector<32x16xbf16>
    %cst_23 = arith.constant dense<0.000000e+00> : vector<8x16xf32>
    %35 = tpu.matmul %33, %34, %cst_23 {dimension_numbers = #tpu.dot_dimension_numbers<[1], [0], [0], [1], [0, 0, 1, 1], [], []>} : vector<8x32xbf16>, vector<32x16xbf16>, vector<8x16xf32> -> vector<8x16xf32>
    %c4 = arith.constant 4 : index
    %c0_24 = arith.constant 0 : index
    %36 = vector.load %arg12[%c4, %c0_24] : memref<10x784xf32, #tpu.memory_space<vmem>>, vector<1x16xf32>
    %37 = vector.broadcast %36 : vector<1x16xf32> to vector<8x16xf32>
    %38 = arith.addf %35, %37 : vector<8x16xf32>
    %cst_25 = arith.constant 0.000000e+00 : f32
    %39 = vector.broadcast %cst_25 : f32 to vector<8x16xf32>
    %40 = arith.maximumf %38, %39 : vector<8x16xf32>
    %41 = arith.truncf %40 : vector<8x16xf32> to vector<8x16xbf16>
    %c0_26 = arith.constant 0 : index
    %c0_27 = arith.constant 0 : index
    %42 = vector.load %arg7[%c0_26, %c0_27] : memref<16x32xbf16, #tpu.memory_space<vmem>>, vector<16x32xbf16>
    %cst_28 = arith.constant dense<0.000000e+00> : vector<8x32xf32>
    %43 = tpu.matmul %41, %42, %cst_28 {dimension_numbers = #tpu.dot_dimension_numbers<[1], [0], [0], [1], [0, 0, 1, 1], [], []>} : vector<8x16xbf16>, vector<16x32xbf16>, vector<8x32xf32> -> vector<8x32xf32>
    %c5 = arith.constant 5 : index
    %c0_29 = arith.constant 0 : index
    %44 = vector.load %arg12[%c5, %c0_29] : memref<10x784xf32, #tpu.memory_space<vmem>>, vector<1x32xf32>
    %45 = vector.broadcast %44 : vector<1x32xf32> to vector<8x32xf32>
    %46 = arith.addf %43, %45 : vector<8x32xf32>
    %cst_30 = arith.constant 0.000000e+00 : f32
    %47 = vector.broadcast %cst_30 : f32 to vector<8x32xf32>
    %48 = arith.maximumf %46, %47 : vector<8x32xf32>
    %49 = arith.truncf %48 : vector<8x32xf32> to vector<8x32xbf16>
    %c0_31 = arith.constant 0 : index
    %c0_32 = arith.constant 0 : index
    %50 = vector.load %arg8[%c0_31, %c0_32] : memref<32x64xbf16, #tpu.memory_space<vmem>>, vector<32x64xbf16>
    %cst_33 = arith.constant dense<0.000000e+00> : vector<8x64xf32>
    %51 = tpu.matmul %49, %50, %cst_33 {dimension_numbers = #tpu.dot_dimension_numbers<[1], [0], [0], [1], [0, 0, 1, 1], [], []>} : vector<8x32xbf16>, vector<32x64xbf16>, vector<8x64xf32> -> vector<8x64xf32>
    %c6 = arith.constant 6 : index
    %c0_34 = arith.constant 0 : index
    %52 = vector.load %arg12[%c6, %c0_34] : memref<10x784xf32, #tpu.memory_space<vmem>>, vector<1x64xf32>
    %53 = vector.broadcast %52 : vector<1x64xf32> to vector<8x64xf32>
    %54 = arith.addf %51, %53 : vector<8x64xf32>
    %cst_35 = arith.constant 0.000000e+00 : f32
    %55 = vector.broadcast %cst_35 : f32 to vector<8x64xf32>
    %56 = arith.maximumf %54, %55 : vector<8x64xf32>
    %57 = arith.truncf %56 : vector<8x64xf32> to vector<8x64xbf16>
    %c0_36 = arith.constant 0 : index
    %c0_37 = arith.constant 0 : index
    %58 = vector.load %arg9[%c0_36, %c0_37] : memref<64x128xbf16, #tpu.memory_space<vmem>>, vector<64x128xbf16>
    %cst_38 = arith.constant dense<0.000000e+00> : vector<8x128xf32>
    %59 = tpu.matmul %57, %58, %cst_38 {dimension_numbers = #tpu.dot_dimension_numbers<[1], [0], [0], [1], [0, 0, 1, 1], [], []>} : vector<8x64xbf16>, vector<64x128xbf16>, vector<8x128xf32> -> vector<8x128xf32>
    %c7 = arith.constant 7 : index
    %c0_39 = arith.constant 0 : index
    %60 = vector.load %arg12[%c7, %c0_39] : memref<10x784xf32, #tpu.memory_space<vmem>>, vector<1x128xf32>
    %61 = vector.broadcast %60 : vector<1x128xf32> to vector<8x128xf32>
    %62 = arith.addf %59, %61 : vector<8x128xf32>
    %cst_40 = arith.constant 0.000000e+00 : f32
    %63 = vector.broadcast %cst_40 : f32 to vector<8x128xf32>
    %64 = arith.maximumf %62, %63 : vector<8x128xf32>
    %65 = arith.truncf %64 : vector<8x128xf32> to vector<8x128xbf16>
    %c0_41 = arith.constant 0 : index
    %c0_42 = arith.constant 0 : index
    %66 = vector.load %arg10[%c0_41, %c0_42] : memref<128x256xbf16, #tpu.memory_space<vmem>>, vector<128x256xbf16>
    %cst_43 = arith.constant dense<0.000000e+00> : vector<8x256xf32>
    %67 = tpu.matmul %65, %66, %cst_43 {dimension_numbers = #tpu.dot_dimension_numbers<[1], [0], [0], [1], [0, 0, 1, 1], [], []>} : vector<8x128xbf16>, vector<128x256xbf16>, vector<8x256xf32> -> vector<8x256xf32>
    %c8 = arith.constant 8 : index
    %c0_44 = arith.constant 0 : index
    %68 = vector.load %arg12[%c8, %c0_44] : memref<10x784xf32, #tpu.memory_space<vmem>>, vector<1x256xf32>
    %69 = vector.broadcast %68 : vector<1x256xf32> to vector<8x256xf32>
    %70 = arith.addf %67, %69 : vector<8x256xf32>
    %cst_45 = arith.constant 0.000000e+00 : f32
    %71 = vector.broadcast %cst_45 : f32 to vector<8x256xf32>
    %72 = arith.maximumf %70, %71 : vector<8x256xf32>
    %73 = arith.truncf %72 : vector<8x256xf32> to vector<8x256xbf16>
    %c0_46 = arith.constant 0 : index
    %c0_47 = arith.constant 0 : index
    %74 = vector.load %arg11[%c0_46, %c0_47] : memref<256x784xbf16, #tpu.memory_space<vmem>>, vector<256x784xbf16>
    %cst_48 = arith.constant dense<0.000000e+00> : vector<8x784xf32>
    %75 = tpu.matmul %73, %74, %cst_48 {dimension_numbers = #tpu.dot_dimension_numbers<[1], [0], [0], [1], [0, 0, 1, 1], [], []>} : vector<8x256xbf16>, vector<256x784xbf16>, vector<8x784xf32> -> vector<8x784xf32>
    %c9 = arith.constant 9 : index
    %c0_49 = arith.constant 0 : index
    %76 = vector.load %arg12[%c9, %c0_49] : memref<10x784xf32, #tpu.memory_space<vmem>>, vector<1x784xf32>
    %77 = vector.broadcast %76 : vector<1x784xf32> to vector<8x784xf32>
    %78 = arith.addf %75, %77 : vector<8x784xf32>
    %cst_50 = arith.constant 0.000000e+00 : f32
    %79 = vector.broadcast %cst_50 : f32 to vector<8x784xf32>
    %80 = arith.maximumf %78, %79 : vector<8x784xf32>
    %c0_51 = arith.constant 0 : index
    %c0_52 = arith.constant 0 : index
    %81 = vector.load %arg13[%c0_51, %c0_52] : memref<8x784xf32, #tpu.memory_space<vmem>>, vector<8x784xf32>
    tpu.vector_store %arg13[%c0_51, %c0_52], %80 {strides = array<i32>} : memref<8x784xf32, #tpu.memory_space<vmem>>, vector<8x784xf32>,
    return
  }
  func.func @transform_0(%arg0: i32) -> (i32, i32) {
    %c0_i32 = arith.constant 0 : i32
    %c0_i32_0 = arith.constant 0 : i32
    return %arg0, %c0_i32 : i32, i32
  }
  func.func @transform_1(%arg0: i32) -> (i32, i32) {
    %c0_i32 = arith.constant 0 : i32
    %c0_i32_0 = arith.constant 0 : i32
    %c0_i32_1 = arith.constant 0 : i32
    return %c0_i32, %c0_i32_0 : i32, i32
  }
  func.func @transform_2(%arg0: i32) -> (i32, i32) {
    %c0_i32 = arith.constant 0 : i32
    %c0_i32_0 = arith.constant 0 : i32
    %c0_i32_1 = arith.constant 0 : i32
    return %c0_i32, %c0_i32_0 : i32, i32
  }
  func.func @transform_3(%arg0: i32) -> (i32, i32) {
    %c0_i32 = arith.constant 0 : i32
    %c0_i32_0 = arith.constant 0 : i32
    %c0_i32_1 = arith.constant 0 : i32
    return %c0_i32, %c0_i32_0 : i32, i32
  }
  func.func @transform_4(%arg0: i32) -> (i32, i32) {
    %c0_i32 = arith.constant 0 : i32
    %c0_i32_0 = arith.constant 0 : i32
    %c0_i32_1 = arith.constant 0 : i32
    return %c0_i32, %c0_i32_0 : i32, i32
  }
  func.func @transform_5(%arg0: i32) -> (i32, i32) {
    %c0_i32 = arith.constant 0 : i32
    %c0_i32_0 = arith.constant 0 : i32
    %c0_i32_1 = arith.constant 0 : i32
    return %c0_i32, %c0_i32_0 : i32, i32
  }
  func.func @transform_6(%arg0: i32) -> (i32, i32) {
    %c0_i32 = arith.constant 0 : i32
    %c0_i32_0 = arith.constant 0 : i32
    %c0_i32_1 = arith.constant 0 : i32
    return %c0_i32, %c0_i32_0 : i32, i32
  }
  func.func @transform_7(%arg0: i32) -> (i32, i32) {
    %c0_i32 = arith.constant 0 : i32
    %c0_i32_0 = arith.constant 0 : i32
    %c0_i32_1 = arith.constant 0 : i32
    return %c0_i32, %c0_i32_0 : i32, i32
  }
  func.func @transform_8(%arg0: i32) -> (i32, i32) {
    %c0_i32 = arith.constant 0 : i32
    %c0_i32_0 = arith.constant 0 : i32
    %c0_i32_1 = arith.constant 0 : i32
    return %c0_i32, %c0_i32_0 : i32, i32
  }
  func.func @transform_9(%arg0: i32) -> (i32, i32) {
    %c0_i32 = arith.constant 0 : i32
    %c0_i32_0 = arith.constant 0 : i32
    %c0_i32_1 = arith.constant 0 : i32
    return %c0_i32, %c0_i32_0 : i32, i32
  }
  func.func @transform_10(%arg0: i32) -> (i32, i32) {
    %c0_i32 = arith.constant 0 : i32
    %c0_i32_0 = arith.constant 0 : i32
    %c0_i32_1 = arith.constant 0 : i32
    return %c0_i32, %c0_i32_0 : i32, i32
  }
  func.func @transform_11(%arg0: i32) -> (i32, i32) {
    %c0_i32 = arith.constant 0 : i32
    %c0_i32_0 = arith.constant 0 : i32
    %c0_i32_1 = arith.constant 0 : i32
    return %c0_i32, %c0_i32_0 : i32, i32
  }
  func.func @transform_12(%arg0: i32) -> (i32, i32) {
    %c0_i32 = arith.constant 0 : i32
    %c0_i32_0 = arith.constant 0 : i32
    return %arg0, %c0_i32 : i32, i32
  }
}

</mosaic_0001>

<llo_original>
// kernel: tpu_custom_call.1
$region0: #{tpu_custom_call.1}
  #allocation0 [shape = 'u32[]', space=smem, size = 0x4, offset = 0x4, fixed_abs, tag = 'smem constant byte address 0x4 - core index']
  #allocation1 [shape = 'u32[72,128]{1,0:T(1,128)}', space=vmem, size = 0x9000, scoped, tag = 'internal scratch']
  %s0 = inlined_call_operand.vmem [shape: f32[8,784], index: 0, kind: input, shape index: {}]
  %s1 = inlined_call_operand.vmem [shape: bf16[784,256], index: 1, kind: input, shape index: {}]
  %s2 = inlined_call_operand.vmem [shape: bf16[256,128], index: 2, kind: input, shape index: {}]
  %s3 = inlined_call_operand.vmem [shape: bf16[128,64], index: 3, kind: input, shape index: {}]
  %s4 = inlined_call_operand.vmem [shape: bf16[64,32], index: 4, kind: input, shape index: {}]
  %s5 = inlined_call_operand.vmem [shape: bf16[32,16], index: 5, kind: input, shape index: {}]
  %s6 = inlined_call_operand.vmem [shape: bf16[16,32], index: 6, kind: input, shape index: {}]
  %s7 = inlined_call_operand.vmem [shape: bf16[32,64], index: 7, kind: input, shape index: {}]
  %s8 = inlined_call_operand.vmem [shape: bf16[64,128], index: 8, kind: input, shape index: {}]
  %s9 = inlined_call_operand.vmem [shape: bf16[128,256], index: 9, kind: input, shape index: {}]
  %s10 = inlined_call_operand.vmem [shape: bf16[256,784], index: 10, kind: input, shape index: {}]
  %s11 = inlined_call_operand.vmem [shape: f32[10,784], index: 11, kind: input, shape index: {}]
  %s12 = inlined_call_operand.hbm [shape: f32[8,784], index: 12, kind: output, shape index: {}]
  %s13 = sld [smem:[#allocation0]]
  $region58: #{tpu_custom_call.1} parent=0
    _
  %s15 = ssub.s32 1, %s13
  %s16 = scalar_select 0, %s15, %s13
  $region1: #{tpu_custom_call.1} parent=0
    #allocation2 [shape = 'u8[28672]{0}', space=vmem, size = 0x7000, scoped, tag = 'output window, operand 0, single buffered']
    #allocation3 [shape = 's32[1]{0}', space=sflag, size = 0x4, scoped, tag = 'scoped memory for tpu_custom_call.1']
    %17 = vsyncpa [#allocation3], 0
    // Predicated region
    $region2: #{tpu_custom_call.1} parent=1 // pred_check
      _
    $region3: #{tpu_custom_call.1} parent=1 // pred_check_branch
      %19 = sbr.rel (0) target = $region5
    $region4: #{tpu_custom_call.1} parent=1 // pred_region
      _
    $region5: #{tpu_custom_call.1} parent=1 // pred_fallthru
      _
    // Predicated region
    $region6: #{tpu_custom_call.1} parent=1 // pred_check
      _
    $region7: #{tpu_custom_call.1} parent=1 // pred_check_branch
      %21 = sbr.rel (0) target = $region9
    $region8: #{tpu_custom_call.1} parent=1 // pred_region
      _
    $region9: #{tpu_custom_call.1} parent=1 // pred_fallthru
      _
    // Predicated region
    $region10: #{tpu_custom_call.1} parent=1 // pred_check
      _
    $region11: #{tpu_custom_call.1} parent=1 // pred_check_branch
      %23 = sbr.rel (0) target = $region13
    $region12: #{tpu_custom_call.1} parent=1 // pred_region
      _
    $region13: #{tpu_custom_call.1} parent=1 // pred_fallthru
      _
    // Predicated region
    $region14: #{tpu_custom_call.1} parent=1 // pred_check
      _
    $region15: #{tpu_custom_call.1} parent=1 // pred_check_branch
      %25 = sbr.rel (0) target = $region17
    $region16: #{tpu_custom_call.1} parent=1 // pred_region
      _
    $region17: #{tpu_custom_call.1} parent=1 // pred_fallthru
      _
    // Predicated region
    $region18: #{tpu_custom_call.1} parent=1 // pred_check
      _
    $region19: #{tpu_custom_call.1} parent=1 // pred_check_branch
      %27 = sbr.rel (0) target = $region21
    $region20: #{tpu_custom_call.1} parent=1 // pred_region
      _
    $region21: #{tpu_custom_call.1} parent=1 // pred_fallthru
      _
    // Predicated region
    $region22: #{tpu_custom_call.1} parent=1 // pred_check
      _
    $region23: #{tpu_custom_call.1} parent=1 // pred_check_branch
      %29 = sbr.rel (0) target = $region25
    $region24: #{tpu_custom_call.1} parent=1 // pred_region
      _
    $region25: #{tpu_custom_call.1} parent=1 // pred_fallthru
      _
    // Predicated region
    $region26: #{tpu_custom_call.1} parent=1 // pred_check
      _
    $region27: #{tpu_custom_call.1} parent=1 // pred_check_branch
      %31 = sbr.rel (0) target = $region29
    $region28: #{tpu_custom_call.1} parent=1 // pred_region
      _
    $region29: #{tpu_custom_call.1} parent=1 // pred_fallthru
      _
    // Predicated region
    $region30: #{tpu_custom_call.1} parent=1 // pred_check
      _
    $region31: #{tpu_custom_call.1} parent=1 // pred_check_branch
      %33 = sbr.rel (0) target = $region33
    $region32: #{tpu_custom_call.1} parent=1 // pred_region
      _
    $region33: #{tpu_custom_call.1} parent=1 // pred_fallthru
      _
    // Predicated region
    $region34: #{tpu_custom_call.1} parent=1 // pred_check
      _
    $region35: #{tpu_custom_call.1} parent=1 // pred_check_branch
      %35 = sbr.rel (0) target = $region37
    $region36: #{tpu_custom_call.1} parent=1 // pred_region
      _
    $region37: #{tpu_custom_call.1} parent=1 // pred_fallthru
      _
    // Predicated region
    $region38: #{tpu_custom_call.1} parent=1 // pred_check
      _
    $region39: #{tpu_custom_call.1} parent=1 // pred_check_branch
      %37 = sbr.rel (0) target = $region41
    $region40: #{tpu_custom_call.1} parent=1 // pred_region
      _
    $region41: #{tpu_custom_call.1} parent=1 // pred_fallthru
      _
    // Predicated region
    $region42: #{tpu_custom_call.1} parent=1 // pred_check
      _
    $region43: #{tpu_custom_call.1} parent=1 // pred_check_branch
      %39 = sbr.rel (0) target = $region45
    $region44: #{tpu_custom_call.1} parent=1 // pred_region
      _
    $region45: #{tpu_custom_call.1} parent=1 // pred_fallthru
      _
    // Predicated region
    $region46: #{tpu_custom_call.1} parent=1 // pred_check
      _
    $region47: #{tpu_custom_call.1} parent=1 // pred_check_branch
      %41 = sbr.rel (0) target = $region49
    $region48: #{tpu_custom_call.1} parent=1 // pred_region
      _
    $region49: #{tpu_custom_call.1} parent=1 // pred_fallthru
      _
    %v43 = vld [vmem:[%s0] sm:$0xff]
    %v44 = vld [vmem:[%s0 + $0x8] sm:$0xff]
    %v45 = vld [vmem:[%s0 + $0x10] sm:$0xff]
    %v46 = vld [vmem:[%s0 + $0x18] sm:$0xff]
    %v47 = vld [vmem:[%s0 + $0x20] sm:$0xff]
    %v48 = vld [vmem:[%s0 + $0x28] sm:$0xff]
    %v49 = vld [vmem:[%s0 + $0x30] sm:$0xff]
    %v50 = vpack.c.bf16 %v43, %v43
    %v51 = vpack.c.bf16 %v44, %v44
    %v52 = vpack.c.bf16 %v45, %v45
    %v53 = vpack.c.bf16 %v46, %v46
    %v54 = vpack.c.bf16 %v47, %v47
    %v55 = vpack.c.bf16 %v48, %v48
    %v56 = vpack.c.bf16 %v49, %v49
    %v57 = vld [vmem:[%s1] sm:$0xff]
    %v58 = vld [vmem:[%s1 + $0x8] sm:$0xff]
    %v59 = vld [vmem:[%s1 + $0x10] sm:$0xff]
    %v60 = vld [vmem:[%s1 + $0x18] sm:$0xff]
    %v61 = vld [vmem:[%s1 + $0x20] sm:$0xff]
    %v62 = vld [vmem:[%s1 + $0x28] sm:$0xff]
    %v63 = vld [vmem:[%s1 + $0x30] sm:$0xff]
    %v64 = vld [vmem:[%s1 + $0x38] sm:$0xff]
    %v65 = vld [vmem:[%s1 + $0x40] sm:$0xff]
    %v66 = vld [vmem:[%s1 + $0x48] sm:$0xff]
    %v67 = vld [vmem:[%s1 + $0x50] sm:$0xff]
    %v68 = vld [vmem:[%s1 + $0x58] sm:$0xff]
    %v69 = vld [vmem:[%s1 + $0x60] sm:$0xff]
    %v70 = vld [vmem:[%s1 + $0x68] sm:$0xff]
    %v71 = vld [vmem:[%s1 + $0x70] sm:$0xff]
    %v72 = vld [vmem:[%s1 + $0x78] sm:$0xff]
    %v73 = vld [vmem:[%s1 + $0x80] sm:$0xff]
    %v74 = vld [vmem:[%s1 + $0x88] sm:$0xff]
    %v75 = vld [vmem:[%s1 + $0x90] sm:$0xff]
    %v76 = vld [vmem:[%s1 + $0x98] sm:$0xff]
    %v77 = vld [vmem:[%s1 + $0xa0] sm:$0xff]
    %v78 = vld [vmem:[%s1 + $0xa8] sm:$0xff]
    %v79 = vld [vmem:[%s1 + $0xb0] sm:$0xff]
    %v80 = vld [vmem:[%s1 + $0xb8] sm:$0xff]
    %v81 = vld [vmem:[%s1 + $0xc0] sm:$0xff]
    %v82 = vld [vmem:[%s1 + $0xc8] sm:$0xff]
    %v83 = vld [vmem:[%s1 + $0xd0] sm:$0xff]
    %v84 = vld [vmem:[%s1 + $0xd8] sm:$0xff]
    %v85 = vld [vmem:[%s1 + $0xe0] sm:$0xff]
    %v86 = vld [vmem:[%s1 + $0xe8] sm:$0xff]
    %v87 = vld [vmem:[%s1 + $0xf0] sm:$0xff]
    %v88 = vld [vmem:[%s1 + $0xf8] sm:$0xff]
    %v89 = vld [vmem:[%s1 + $0x100] sm:$0xff]
    %v90 = vld [vmem:[%s1 + $0x108] sm:$0xff]
    %v91 = vld [vmem:[%s1 + $0x110] sm:$0xff]
    %v92 = vld [vmem:[%s1 + $0x118] sm:$0xff]
    %v93 = vld [vmem:[%s1 + $0x120] sm:$0xff]
    %v94 = vld [vmem:[%s1 + $0x128] sm:$0xff]
    %v95 = vld [vmem:[%s1 + $0x130] sm:$0xff]
    %v96 = vld [vmem:[%s1 + $0x138] sm:$0xff]
    %v97 = vld [vmem:[%s1 + $0x140] sm:$0xff]
    %v98 = vld [vmem:[%s1 + $0x148] sm:$0xff]
    %v99 = vld [vmem:[%s1 + $0x150] sm:$0xff]
    %v100 = vld [vmem:[%s1 + $0x158] sm:$0xff]
    %v101 = vld [vmem:[%s1 + $0x160] sm:$0xff]
    %v102 = vld [vmem:[%s1 + $0x168] sm:$0xff]
    %v103 = vld [vmem:[%s1 + $0x170] sm:$0xff]
    %v104 = vld [vmem:[%s1 + $0x178] sm:$0xff]
    %v105 = vld [vmem:[%s1 + $0x180] sm:$0xff]
    %v106 = vld [vmem:[%s1 + $0x188] sm:$0xff]
    %v107 = vld [vmem:[%s1 + $0x190] sm:$0xff]
    %v108 = vld [vmem:[%s1 + $0x198] sm:$0xff]
    %v109 = vld [vmem:[%s1 + $0x1a0] sm:$0xff]
    %v110 = vld [vmem:[%s1 + $0x1a8] sm:$0xff]
    %v111 = vld [vmem:[%s1 + $0x1b0] sm:$0xff]
    %v112 = vld [vmem:[%s1 + $0x1b8] sm:$0xff]
    %v113 = vld [vmem:[%s1 + $0x1c0] sm:$0xff]
    %v114 = vld [vmem:[%s1 + $0x1c8] sm:$0xff]
    %v115 = vld [vmem:[%s1 + $0x1d0] sm:$0xff]
    %v116 = vld [vmem:[%s1 + $0x1d8] sm:$0xff]
    %v117 = vld [vmem:[%s1 + $0x1e0] sm:$0xff]
    %v118 = vld [vmem:[%s1 + $0x1e8] sm:$0xff]
    %v119 = vld [vmem:[%s1 + $0x1f0] sm:$0xff]
    %v120 = vld [vmem:[%s1 + $0x1f8] sm:$0xff]
    %v121 = vld [vmem:[%s1 + $0x200] sm:$0xff]
    %v122 = vld [vmem:[%s1 + $0x208] sm:$0xff]
    %v123 = vld [vmem:[%s1 + $0x210] sm:$0xff]
    %v124 = vld [vmem:[%s1 + $0x218] sm:$0xff]
    %v125 = vld [vmem:[%s1 + $0x220] sm:$0xff]
    %v126 = vld [vmem:[%s1 + $0x228] sm:$0xff]
    %v127 = vld [vmem:[%s1 + $0x230] sm:$0xff]
    %v128 = vld [vmem:[%s1 + $0x238] sm:$0xff]
    %v129 = vld [vmem:[%s1 + $0x240] sm:$0xff]
    %v130 = vld [vmem:[%s1 + $0x248] sm:$0xff]
    %v131 = vld [vmem:[%s1 + $0x250] sm:$0xff]
    %v132 = vld [vmem:[%s1 + $0x258] sm:$0xff]
    %v133 = vld [vmem:[%s1 + $0x260] sm:$0xff]
    %v134 = vld [vmem:[%s1 + $0x268] sm:$0xff]
    %v135 = vld [vmem:[%s1 + $0x270] sm:$0xff]
    %v136 = vld [vmem:[%s1 + $0x278] sm:$0xff]
    %v137 = vld [vmem:[%s1 + $0x280] sm:$0xff]
    %v138 = vld [vmem:[%s1 + $0x288] sm:$0xff]
    %v139 = vld [vmem:[%s1 + $0x290] sm:$0xff]
    %v140 = vld [vmem:[%s1 + $0x298] sm:$0xff]
    %v141 = vld [vmem:[%s1 + $0x2a0] sm:$0xff]
    %v142 = vld [vmem:[%s1 + $0x2a8] sm:$0xff]
    %v143 = vld [vmem:[%s1 + $0x2b0] sm:$0xff]
    %v144 = vld [vmem:[%s1 + $0x2b8] sm:$0xff]
    %v145 = vld [vmem:[%s1 + $0x2c0] sm:$0xff]
    %v146 = vld [vmem:[%s1 + $0x2c8] sm:$0xff]
    %v147 = vld [vmem:[%s1 + $0x2d0] sm:$0xff]
    %v148 = vld [vmem:[%s1 + $0x2d8] sm:$0xff]
    %v149 = vld [vmem:[%s1 + $0x2e0] sm:$0xff]
    %v150 = vld [vmem:[%s1 + $0x2e8] sm:$0xff]
    %v151 = vld [vmem:[%s1 + $0x2f0] sm:$0xff]
    %v152 = vld [vmem:[%s1 + $0x2f8] sm:$0xff]
    %v153 = vld [vmem:[%s1 + $0x300] sm:$0xff]
    %v154 = vld [vmem:[%s1 + $0x308] sm:$0xff]
    %v155 = vld [vmem:[%s11] ss:$8 sm:$0x3]
    %v157 = vperm.slane %v155, 0
    %v158 = vperm.slane %v155, 1
    %v259 = vunpack.c.l.b16 %v57
    %v260 = vunpack.c.h.b16 %v57
    %v261 = vunpack.c.l.b16 %v58
    %v262 = vunpack.c.h.b16 %v58
    %v263 = vunpack.c.l.b16 %v59
    %v264 = vunpack.c.h.b16 %v59
    %v265 = vunpack.c.l.b16 %v60
    %v266 = vunpack.c.h.b16 %v60
    %v267 = vunpack.c.l.b16 %v61
    %v268 = vunpack.c.h.b16 %v61
    %v269 = vunpack.c.l.b16 %v62
    %v270 = vunpack.c.h.b16 %v62
    %v271 = vunpack.c.l.b16 %v63
    %v272 = vunpack.c.h.b16 %v63
    %v273 = vunpack.c.l.b16 %v64
    %v274 = vunpack.c.h.b16 %v64
    %v275 = vunpack.c.l.b16 %v65
    %v276 = vunpack.c.h.b16 %v65
    %v277 = vunpack.c.l.b16 %v66
    %v278 = vunpack.c.h.b16 %v66
    %v279 = vunpack.c.l.b16 %v67
    %v280 = vunpack.c.h.b16 %v67
    %v281 = vunpack.c.l.b16 %v68
    %v282 = vunpack.c.h.b16 %v68
    %v283 = vunpack.c.l.b16 %v69
    %v284 = vunpack.c.h.b16 %v69
    %v285 = vunpack.c.l.b16 %v70
    %v286 = vunpack.c.h.b16 %v70
    %v287 = vunpack.c.l.b16 %v71
    %v288 = vunpack.c.h.b16 %v71
    %v289 = vunpack.c.l.b16 %v72
    %v290 = vunpack.c.h.b16 %v72
    %v291 = vunpack.c.l.b16 %v73
    %v292 = vunpack.c.h.b16 %v73
    %v293 = vunpack.c.l.b16 %v74
    %v294 = vunpack.c.h.b16 %v74
    %v295 = vunpack.c.l.b16 %v75
    %v296 = vunpack.c.h.b16 %v75
    %v297 = vunpack.c.l.b16 %v76
    %v298 = vunpack.c.h.b16 %v76
    %v299 = vunpack.c.l.b16 %v77
    %v300 = vunpack.c.h.b16 %v77
    %v301 = vunpack.c.l.b16 %v78
    %v302 = vunpack.c.h.b16 %v78
    %v303 = vunpack.c.l.b16 %v79
    %v304 = vunpack.c.h.b16 %v79
    %v305 = vunpack.c.l.b16 %v80
    %v306 = vunpack.c.h.b16 %v80
    %v307 = vunpack.c.l.b16 %v81
    %v308 = vunpack.c.h.b16 %v81
    %v309 = vunpack.c.l.b16 %v82
    %v310 = vunpack.c.h.b16 %v82
    %v311 = vunpack.c.l.b16 %v83
    %v312 = vunpack.c.h.b16 %v83
    %v313 = vunpack.c.l.b16 %v84
    %v314 = vunpack.c.h.b16 %v84
    %v315 = vunpack.c.l.b16 %v85
    %v316 = vunpack.c.h.b16 %v85
    %v317 = vunpack.c.l.b16 %v86
    %v318 = vunpack.c.h.b16 %v86
    %v319 = vunpack.c.l.b16 %v87
    %v320 = vunpack.c.h.b16 %v87
    %v321 = vunpack.c.l.b16 %v88
    %v322 = vunpack.c.h.b16 %v88
    %v323 = vunpack.c.l.b16 %v89
    %v324 = vunpack.c.h.b16 %v89
    %v325 = vunpack.c.l.b16 %v90
    %v326 = vunpack.c.h.b16 %v90
    %v327 = vunpack.c.l.b16 %v91
    %v328 = vunpack.c.h.b16 %v91
    %v329 = vunpack.c.l.b16 %v92
    %v330 = vunpack.c.h.b16 %v92
    %v331 = vunpack.c.l.b16 %v93
    %v332 = vunpack.c.h.b16 %v93
    %v333 = vunpack.c.l.b16 %v94
    %v334 = vunpack.c.h.b16 %v94
    %v335 = vunpack.c.l.b16 %v95
    %v336 = vunpack.c.h.b16 %v95
    %v337 = vunpack.c.l.b16 %v96
    %v338 = vunpack.c.h.b16 %v96
    %v339 = vunpack.c.l.b16 %v97
    %v340 = vunpack.c.h.b16 %v97
    %v341 = vunpack.c.l.b16 %v98
    %v342 = vunpack.c.h.b16 %v98
    %v343 = vunpack.c.l.b16 %v99
    %v344 = vunpack.c.h.b16 %v99
    %v345 = vunpack.c.l.b16 %v100
    %v346 = vunpack.c.h.b16 %v100
    %v347 = vunpack.c.l.b16 %v101
    %v348 = vunpack.c.h.b16 %v101
    %v349 = vunpack.c.l.b16 %v102
    %v350 = vunpack.c.h.b16 %v102
    %v351 = vunpack.c.l.b16 %v103
    %v352 = vunpack.c.h.b16 %v103
    %v353 = vunpack.c.l.b16 %v104
    %v354 = vunpack.c.h.b16 %v104
    %v355 = vunpack.c.l.b16 %v105
    %v356 = vunpack.c.h.b16 %v105
    %v357 = vunpack.c.l.b16 %v106
    %v358 = vunpack.c.h.b16 %v106
    %v359 = vunpack.c.l.b16 %v107
    %v360 = vunpack.c.h.b16 %v107
    %v361 = vunpack.c.l.b16 %v108
    %v362 = vunpack.c.h.b16 %v108
    %v363 = vunpack.c.l.b16 %v109
    %v364 = vunpack.c.h.b16 %v109
    %v365 = vunpack.c.l.b16 %v110
    %v366 = vunpack.c.h.b16 %v110
    %v367 = vunpack.c.l.b16 %v111
    %v368 = vunpack.c.h.b16 %v111
    %v369 = vunpack.c.l.b16 %v112
    %v370 = vunpack.c.h.b16 %v112
    %v371 = vunpack.c.l.b16 %v113
    %v372 = vunpack.c.h.b16 %v113
    %v373 = vunpack.c.l.b16 %v114
    %v374 = vunpack.c.h.b16 %v114
    %v375 = vunpack.c.l.b16 %v115
    %v376 = vunpack.c.h.b16 %v115
    %v377 = vunpack.c.l.b16 %v116
    %v378 = vunpack.c.h.b16 %v116
    %v379 = vunpack.c.l.b16 %v117
    %v380 = vunpack.c.h.b16 %v117
    %v381 = vunpack.c.l.b16 %v118
    %v382 = vunpack.c.h.b16 %v118
    %v383 = vunpack.c.l.b16 %v119
    %v384 = vunpack.c.h.b16 %v119
    %v385 = vunpack.c.l.b16 %v120
    %v386 = vunpack.c.h.b16 %v120
    %v387 = vunpack.c.l.b16 %v121
    %v388 = vunpack.c.h.b16 %v121
    %v389 = vunpack.c.l.b16 %v122
    %v390 = vunpack.c.h.b16 %v122
    %v391 = vunpack.c.l.b16 %v123
    %v392 = vunpack.c.h.b16 %v123
    %v393 = vunpack.c.l.b16 %v124
    %v394 = vunpack.c.h.b16 %v124
    %v395 = vunpack.c.l.b16 %v125
    %v396 = vunpack.c.h.b16 %v125
    %v397 = vunpack.c.l.b16 %v126
    %v398 = vunpack.c.h.b16 %v126
    %v399 = vunpack.c.l.b16 %v127
    %v400 = vunpack.c.h.b16 %v127
    %v401 = vunpack.c.l.b16 %v128
    %v402 = vunpack.c.h.b16 %v128
    %v403 = vunpack.c.l.b16 %v129
    %v404 = vunpack.c.h.b16 %v129
    %v405 = vunpack.c.l.b16 %v130
    %v406 = vunpack.c.h.b16 %v130
    %v407 = vunpack.c.l.b16 %v131
    %v408 = vunpack.c.h.b16 %v131
    %v409 = vunpack.c.l.b16 %v132
    %v410 = vunpack.c.h.b16 %v132
    %v411 = vunpack.c.l.b16 %v133
    %v412 = vunpack.c.h.b16 %v133
    %v413 = vunpack.c.l.b16 %v134
    %v414 = vunpack.c.h.b16 %v134
    %v415 = vunpack.c.l.b16 %v135
    %v416 = vunpack.c.h.b16 %v135
    %v417 = vunpack.c.l.b16 %v136
    %v418 = vunpack.c.h.b16 %v136
    %v419 = vunpack.c.l.b16 %v137
    %v420 = vunpack.c.h.b16 %v137
    %v421 = vunpack.c.l.b16 %v138
    %v422 = vunpack.c.h.b16 %v138
    %v423 = vunpack.c.l.b16 %v139
    %v424 = vunpack.c.h.b16 %v139
    %v425 = vunpack.c.l.b16 %v140
    %v426 = vunpack.c.h.b16 %v140
    %v427 = vunpack.c.l.b16 %v141
    %v428 = vunpack.c.h.b16 %v141
    %v429 = vunpack.c.l.b16 %v142
    %v430 = vunpack.c.h.b16 %v142
    %v431 = vunpack.c.l.b16 %v143
    %v432 = vunpack.c.h.b16 %v143
    %v433 = vunpack.c.l.b16 %v144
    %v434 = vunpack.c.h.b16 %v144
    %v435 = vunpack.c.l.b16 %v145
    %v436 = vunpack.c.h.b16 %v145
    %v437 = vunpack.c.l.b16 %v146
    %v438 = vunpack.c.h.b16 %v146
    %v439 = vunpack.c.l.b16 %v147
    %v440 = vunpack.c.h.b16 %v147
    %v441 = vunpack.c.l.b16 %v148
    %v442 = vunpack.c.h.b16 %v148
    %v443 = vunpack.c.l.b16 %v149
    %v444 = vunpack.c.h.b16 %v149
    %v445 = vunpack.c.l.b16 %v150
    %v446 = vunpack.c.h.b16 %v150
    %v447 = vunpack.c.l.b16 %v151
    %v448 = vunpack.c.h.b16 %v151
    %v449 = vunpack.c.l.b16 %v152
    %v450 = vunpack.c.h.b16 %v152
    %v451 = vunpack.c.l.b16 %v153
    %v452 = vunpack.c.h.b16 %v153
    %v453 = vunpack.c.l.b16 %v154
    %v454 = vunpack.c.h.b16 %v154
    %v455 = vpack.c.b16 %v261, %v259
    %v456 = vpack.c.b16 %v262, %v260
    %v457 = vpack.c.b16 %v265, %v263
    %v458 = vpack.c.b16 %v266, %v264
    %v459 = vpack.c.b16 %v269, %v267
    %v460 = vpack.c.b16 %v270, %v268
    %v461 = vpack.c.b16 %v273, %v271
    %v462 = vpack.c.b16 %v274, %v272
    %v463 = vpack.c.b16 %v277, %v275
    %v464 = vpack.c.b16 %v278, %v276
    %v465 = vpack.c.b16 %v281, %v279
    %v466 = vpack.c.b16 %v282, %v280
    %v467 = vpack.c.b16 %v285, %v283
    %v468 = vpack.c.b16 %v286, %v284
    %v469 = vpack.c.b16 %v289, %v287
    %v470 = vpack.c.b16 %v290, %v288
    %v471 = vpack.c.b16 %v293, %v291
    %v472 = vpack.c.b16 %v294, %v292
    %v473 = vpack.c.b16 %v297, %v295
    %v474 = vpack.c.b16 %v298, %v296
    %v475 = vpack.c.b16 %v301, %v299
    %v476 = vpack.c.b16 %v302, %v300
    %v477 = vpack.c.b16 %v305, %v303
    %v478 = vpack.c.b16 %v306, %v304
    %v479 = vpack.c.b16 %v309, %v307
    %v480 = vpack.c.b16 %v310, %v308
    %v481 = vpack.c.b16 %v313, %v311
    %v482 = vpack.c.b16 %v314, %v312
    %v483 = vpack.c.b16 %v317, %v315
    %v484 = vpack.c.b16 %v318, %v316
    %v485 = vpack.c.b16 %v321, %v319
    %v486 = vpack.c.b16 %v322, %v320
    %v487 = vpack.c.b16 %v325, %v323
    %v488 = vpack.c.b16 %v326, %v324
    %v489 = vpack.c.b16 %v329, %v327
    %v490 = vpack.c.b16 %v330, %v328
    %v491 = vpack.c.b16 %v333, %v331
    %v492 = vpack.c.b16 %v334, %v332
    %v493 = vpack.c.b16 %v337, %v335
    %v494 = vpack.c.b16 %v338, %v336
    %v495 = vpack.c.b16 %v341, %v339
    %v496 = vpack.c.b16 %v342, %v340
    %v497 = vpack.c.b16 %v345, %v343
    %v498 = vpack.c.b16 %v346, %v344
    %v499 = vpack.c.b16 %v349, %v347
    %v500 = vpack.c.b16 %v350, %v348
    %v501 = vpack.c.b16 %v353, %v351
    %v502 = vpack.c.b16 %v354, %v352
    %v503 = vpack.c.b16 %v357, %v355
    %v504 = vpack.c.b16 %v358, %v356
    %v505 = vpack.c.b16 %v361, %v359
    %v506 = vpack.c.b16 %v362, %v360
    %v507 = vpack.c.b16 %v365, %v363
    %v508 = vpack.c.b16 %v366, %v364
    %v509 = vpack.c.b16 %v369, %v367
    %v510 = vpack.c.b16 %v370, %v368
    %v511 = vpack.c.b16 %v373, %v371
    %v512 = vpack.c.b16 %v374, %v372
    %v513 = vpack.c.b16 %v377, %v375
    %v514 = vpack.c.b16 %v378, %v376
    %v515 = vpack.c.b16 %v381, %v379
    %v516 = vpack.c.b16 %v382, %v380
    %v517 = vpack.c.b16 %v385, %v383
    %v518 = vpack.c.b16 %v386, %v384
    %v519 = vpack.c.b16 %v389, %v387
    %v520 = vpack.c.b16 %v390, %v388
    %v521 = vpack.c.b16 %v393, %v391
    %v522 = vpack.c.b16 %v394, %v392
    %v523 = vpack.c.b16 %v397, %v395
    %v524 = vpack.c.b16 %v398, %v396
    %v525 = vpack.c.b16 %v401, %v399
    %v526 = vpack.c.b16 %v402, %v400
    %v527 = vpack.c.b16 %v405, %v403
    %v528 = vpack.c.b16 %v406, %v404
    %v529 = vpack.c.b16 %v409, %v407
    %v530 = vpack.c.b16 %v410, %v408
    %v531 = vpack.c.b16 %v413, %v411
    %v532 = vpack.c.b16 %v414, %v412
    %v533 = vpack.c.b16 %v417, %v415
    %v534 = vpack.c.b16 %v418, %v416
    %v535 = vpack.c.b16 %v421, %v419
    %v536 = vpack.c.b16 %v422, %v420
    %v537 = vpack.c.b16 %v425, %v423
    %v538 = vpack.c.b16 %v426, %v424
    %v539 = vpack.c.b16 %v429, %v427
    %v540 = vpack.c.b16 %v430, %v428
    %v541 = vpack.c.b16 %v433, %v431
    %v542 = vpack.c.b16 %v434, %v432
    %v543 = vpack.c.b16 %v437, %v435
    %v544 = vpack.c.b16 %v438, %v436
    %v545 = vpack.c.b16 %v441, %v439
    %v546 = vpack.c.b16 %v442, %v440
    %v547 = vpack.c.b16 %v445, %v443
    %v548 = vpack.c.b16 %v446, %v444
    %v549 = vpack.c.b16 %v449, %v447
    %v550 = vpack.c.b16 %v450, %v448
    %v551 = vpack.c.b16 %v453, %v451
    %v552 = vpack.c.b16 %v454, %v452
    %vm651 = vcmask 130048
    %v653 = vsel %vm651, %v56, 0
    %655 = vmatpush.bf16.msra.mxu0 %v469
    %656 = vmatpush.bf16.msra.mxu0 %v467
    %657 = vmatpush.bf16.msra.mxu0 %v465
    %658 = vmatpush.bf16.msra.mxu0 %v463
    %659 = vmatpush.bf16.msra.mxu0 %v461
    %660 = vmatpush.bf16.msra.mxu0 %v459
    %661 = vmatpush.bf16.msra.mxu0 %v457
    %662 = vmatpush.bf16.msra.mxu0 %v455
    %663 = vmatmul.bf16.gmra.mxu0 %v50
    %v664 = vpop.f32.mrf.mxu0
    %v665 = vadd.f32 %v157, %v664
    %v666 = vpop.f32.mrf.mxu0
    %667 = vdwg.mxu0
    %668 = vmatpush.bf16.msra.mxu0 %v485
    %669 = vmatpush.bf16.msra.mxu0 %v483
    %670 = vmatpush.bf16.msra.mxu0 %v481
    %671 = vmatpush.bf16.msra.mxu0 %v479
    %672 = vmatpush.bf16.msra.mxu0 %v477
    %673 = vmatpush.bf16.msra.mxu0 %v475
    %674 = vmatpush.bf16.msra.mxu0 %v473
    %675 = vmatpush.bf16.msra.mxu0 %v471
    %676 = vmatmul.bf16.gmra.mxu0 %v51
    %v677 = vpop.f32.mrf.mxu0
    %v678 = vadd.f32 %v665, %v677
    %v679 = vpop.f32.mrf.mxu0
    %680 = vdwg.mxu0
    %681 = vmatpush.bf16.msra.mxu0 %v501
    %682 = vmatpush.bf16.msra.mxu0 %v499
    %683 = vmatpush.bf16.msra.mxu0 %v497
    %684 = vmatpush.bf16.msra.mxu0 %v495
    %685 = vmatpush.bf16.msra.mxu0 %v493
    %686 = vmatpush.bf16.msra.mxu0 %v491
    %687 = vmatpush.bf16.msra.mxu0 %v489
    %688 = vmatpush.bf16.msra.mxu0 %v487
    %689 = vmatmul.bf16.gmra.mxu0 %v52
    %v690 = vpop.f32.mrf.mxu0
    %v691 = vadd.f32 %v678, %v690
    %v692 = vpop.f32.mrf.mxu0
    %693 = vdwg.mxu0
    %694 = vmatpush.bf16.msra.mxu0 %v517
    %695 = vmatpush.bf16.msra.mxu0 %v515
    %696 = vmatpush.bf16.msra.mxu0 %v513
    %697 = vmatpush.bf16.msra.mxu0 %v511
    %698 = vmatpush.bf16.msra.mxu0 %v509
    %699 = vmatpush.bf16.msra.mxu0 %v507
    %700 = vmatpush.bf16.msra.mxu0 %v505
    %701 = vmatpush.bf16.msra.mxu0 %v503
    %702 = vmatmul.bf16.gmra.mxu0 %v53
    %v703 = vpop.f32.mrf.mxu0
    %v704 = vadd.f32 %v691, %v703
    %v705 = vpop.f32.mrf.mxu0
    %706 = vdwg.mxu0
    %707 = vmatpush.bf16.msra.mxu0 %v533
    %708 = vmatpush.bf16.msra.mxu0 %v531
    %709 = vmatpush.bf16.msra.mxu0 %v529
    %710 = vmatpush.bf16.msra.mxu0 %v527
    %711 = vmatpush.bf16.msra.mxu0 %v525
    %712 = vmatpush.bf16.msra.mxu0 %v523
    %713 = vmatpush.bf16.msra.mxu0 %v521
    %714 = vmatpush.bf16.msra.mxu0 %v519
    %715 = vmatmul.bf16.gmra.mxu0 %v54
    %v716 = vpop.f32.mrf.mxu0
    %v717 = vadd.f32 %v704, %v716
    %v718 = vpop.f32.mrf.mxu0
    %719 = vdwg.mxu0
    %720 = vmatpush.bf16.msra.mxu0 %v549
    %721 = vmatpush.bf16.msra.mxu0 %v547
    %722 = vmatpush.bf16.msra.mxu0 %v545
    %723 = vmatpush.bf16.msra.mxu0 %v543
    %724 = vmatpush.bf16.msra.mxu0 %v541
    %725 = vmatpush.bf16.msra.mxu0 %v539
    %726 = vmatpush.bf16.msra.mxu0 %v537
    %727 = vmatpush.bf16.msra.mxu0 %v535
    %728 = vmatmul.bf16.gmra.mxu0 %v55
    %v729 = vpop.f32.mrf.mxu0
    %v730 = vadd.f32 %v717, %v729
    %v731 = vpop.f32.mrf.mxu0
    %732 = vdwg.mxu0
    %733 = vmatpush.bf16.msra.mxu0 0
    %734 = vmatpush.bf16.msra.mxu0 0
    %735 = vmatpush.bf16.msra.mxu0 0
    %736 = vmatpush.bf16.msra.mxu0 0
    %737 = vmatpush.bf16.msra.mxu0 0
    %738 = vmatpush.bf16.msra.mxu0 0
    %739 = vmatpush.bf16.msra.mxu0 0
    %740 = vmatpush.bf16.msra.mxu0 %v551
    %741 = vmatmul.bf16.gmra.mxu0 %v653
    %v742 = vpop.f32.mrf.mxu0
    %v743 = vadd.f32 %v730, %v742
    %v744 = vpop.f32.mrf.mxu0
    %745 = vdwg.mxu0
    %746 = vmatpush.bf16.msra.mxu0 %v470
    %747 = vmatpush.bf16.msra.mxu0 %v468
    %748 = vmatpush.bf16.msra.mxu0 %v466
    %749 = vmatpush.bf16.msra.mxu0 %v464
    %750 = vmatpush.bf16.msra.mxu0 %v462
    %751 = vmatpush.bf16.msra.mxu0 %v460
    %752 = vmatpush.bf16.msra.mxu0 %v458
    %753 = vmatpush.bf16.msra.mxu0 %v456
    %754 = vmatmul.bf16.gmra.mxu0 %v50
    %v755 = vpop.f32.mrf.mxu0
    %v756 = vadd.f32 %v158, %v755
    %v757 = vpop.f32.mrf.mxu0
    %758 = vdwg.mxu0
    %759 = vmatpush.bf16.msra.mxu0 %v486
    %760 = vmatpush.bf16.msra.mxu0 %v484
    %761 = vmatpush.bf16.msra.mxu0 %v482
    %762 = vmatpush.bf16.msra.mxu0 %v480
    %763 = vmatpush.bf16.msra.mxu0 %v478
    %764 = vmatpush.bf16.msra.mxu0 %v476
    %765 = vmatpush.bf16.msra.mxu0 %v474
    %766 = vmatpush.bf16.msra.mxu0 %v472
    %767 = vmatmul.bf16.gmra.mxu0 %v51
    %v768 = vpop.f32.mrf.mxu0
    %v769 = vadd.f32 %v756, %v768
    %v770 = vpop.f32.mrf.mxu0
    %771 = vdwg.mxu0
    %772 = vmatpush.bf16.msra.mxu0 %v502
    %773 = vmatpush.bf16.msra.mxu0 %v500
    %774 = vmatpush.bf16.msra.mxu0 %v498
    %775 = vmatpush.bf16.msra.mxu0 %v496
    %776 = vmatpush.bf16.msra.mxu0 %v494
    %777 = vmatpush.bf16.msra.mxu0 %v492
    %778 = vmatpush.bf16.msra.mxu0 %v490
    %779 = vmatpush.bf16.msra.mxu0 %v488
    %780 = vmatmul.bf16.gmra.mxu0 %v52
    %v781 = vpop.f32.mrf.mxu0
    %v782 = vadd.f32 %v769, %v781
    %v783 = vpop.f32.mrf.mxu0
    %784 = vdwg.mxu0
    %785 = vmatpush.bf16.msra.mxu0 %v518
    %786 = vmatpush.bf16.msra.mxu0 %v516
    %787 = vmatpush.bf16.msra.mxu0 %v514
    %788 = vmatpush.bf16.msra.mxu0 %v512
    %789 = vmatpush.bf16.msra.mxu0 %v510
    %790 = vmatpush.bf16.msra.mxu0 %v508
    %791 = vmatpush.bf16.msra.mxu0 %v506
    %792 = vmatpush.bf16.msra.mxu0 %v504
    %793 = vmatmul.bf16.gmra.mxu0 %v53
    %v794 = vpop.f32.mrf.mxu0
    %v795 = vadd.f32 %v782, %v794
    %v796 = vpop.f32.mrf.mxu0
    %797 = vdwg.mxu0
    %798 = vmatpush.bf16.msra.mxu0 %v534
    %799 = vmatpush.bf16.msra.mxu0 %v532
    %800 = vmatpush.bf16.msra.mxu0 %v530
    %801 = vmatpush.bf16.msra.mxu0 %v528
    %802 = vmatpush.bf16.msra.mxu0 %v526
    %803 = vmatpush.bf16.msra.mxu0 %v524
    %804 = vmatpush.bf16.msra.mxu0 %v522
    %805 = vmatpush.bf16.msra.mxu0 %v520
    %806 = vmatmul.bf16.gmra.mxu0 %v54
    %v807 = vpop.f32.mrf.mxu0
    %v808 = vadd.f32 %v795, %v807
    %v809 = vpop.f32.mrf.mxu0
    %810 = vdwg.mxu0
    %811 = vmatpush.bf16.msra.mxu0 %v550
    %812 = vmatpush.bf16.msra.mxu0 %v548
    %813 = vmatpush.bf16.msra.mxu0 %v546
    %814 = vmatpush.bf16.msra.mxu0 %v544
    %815 = vmatpush.bf16.msra.mxu0 %v542
    %816 = vmatpush.bf16.msra.mxu0 %v540
    %817 = vmatpush.bf16.msra.mxu0 %v538
    %818 = vmatpush.bf16.msra.mxu0 %v536
    %819 = vmatmul.bf16.gmra.mxu0 %v55
    %v820 = vpop.f32.mrf.mxu0
    %v821 = vadd.f32 %v808, %v820
    %v822 = vpop.f32.mrf.mxu0
    %823 = vdwg.mxu0
    %824 = vmatpush.bf16.msra.mxu0 0
    %825 = vmatpush.bf16.msra.mxu0 0
    %826 = vmatpush.bf16.msra.mxu0 0
    %827 = vmatpush.bf16.msra.mxu0 0
    %828 = vmatpush.bf16.msra.mxu0 0
    %829 = vmatpush.bf16.msra.mxu0 0
    %830 = vmatpush.bf16.msra.mxu0 0
    %831 = vmatpush.bf16.msra.mxu0 %v552
    %832 = vmatmul.bf16.gmra.mxu0 %v653
    %v833 = vpop.f32.mrf.mxu0
    %v834 = vadd.f32 %v821, %v833
    %v835 = vpop.f32.mrf.mxu0
    %836 = vdwg.mxu0
    %v837 = vmax.f32 %v743, 0.0
    %v838 = vmax.f32 %v834, 0.0
    %v839 = vpack.c.bf16 %v837, %v837
    %v840 = vpack.c.bf16 %v838, %v838
    %v841 = vld [vmem:[%s2] sm:$0xf]
    %v842 = vld [vmem:[%s2 + $0x4] sm:$0xf]
    %v843 = vld [vmem:[%s2 + $0x8] sm:$0xf]
    %v844 = vld [vmem:[%s2 + $0xc] sm:$0xf]
    %v845 = vld [vmem:[%s2 + $0x10] sm:$0xf]
    %v846 = vld [vmem:[%s2 + $0x14] sm:$0xf]
    %v847 = vld [vmem:[%s2 + $0x18] sm:$0xf]
    %v848 = vld [vmem:[%s2 + $0x1c] sm:$0xf]
    %v849 = vld [vmem:[%s2 + $0x20] sm:$0xf]
    %v850 = vld [vmem:[%s2 + $0x24] sm:$0xf]
    %v851 = vld [vmem:[%s2 + $0x28] sm:$0xf]
    %v852 = vld [vmem:[%s2 + $0x2c] sm:$0xf]
    %v853 = vld [vmem:[%s2 + $0x30] sm:$0xf]
    %v854 = vld [vmem:[%s2 + $0x34] sm:$0xf]
    %v855 = vld [vmem:[%s2 + $0x38] sm:$0xf]
    %v856 = vld [vmem:[%s2 + $0x3c] sm:$0xf]
    %v857 = vld [vmem:[%s2 + $0x40] sm:$0xf]
    %v858 = vld [vmem:[%s2 + $0x44] sm:$0xf]
    %v859 = vld [vmem:[%s2 + $0x48] sm:$0xf]
    %v860 = vld [vmem:[%s2 + $0x4c] sm:$0xf]
    %v861 = vld [vmem:[%s2 + $0x50] sm:$0xf]
    %v862 = vld [vmem:[%s2 + $0x54] sm:$0xf]
    %v863 = vld [vmem:[%s2 + $0x58] sm:$0xf]
    %v864 = vld [vmem:[%s2 + $0x5c] sm:$0xf]
    %v865 = vld [vmem:[%s2 + $0x60] sm:$0xf]
    %v866 = vld [vmem:[%s2 + $0x64] sm:$0xf]
    %v867 = vld [vmem:[%s2 + $0x68] sm:$0xf]
    %v868 = vld [vmem:[%s2 + $0x6c] sm:$0xf]
    %v869 = vld [vmem:[%s2 + $0x70] sm:$0xf]
    %v870 = vld [vmem:[%s2 + $0x74] sm:$0xf]
    %v871 = vld [vmem:[%s2 + $0x78] sm:$0xf]
    %v872 = vld [vmem:[%s2 + $0x7c] sm:$0xf]
    %v873 = vld [vmem:[%s11 + $0x1] ss:$0 sm:$0xff]
    %v906 = vunpack.c.l.b16 %v841
    %v907 = vunpack.c.l.b16 %v842
    %v908 = vunpack.c.l.b16 %v843
    %v909 = vunpack.c.l.b16 %v844
    %v910 = vunpack.c.l.b16 %v845
    %v911 = vunpack.c.l.b16 %v846
    %v912 = vunpack.c.l.b16 %v847
    %v913 = vunpack.c.l.b16 %v848
    %v914 = vunpack.c.l.b16 %v849
    %v915 = vunpack.c.l.b16 %v850
    %v916 = vunpack.c.l.b16 %v851
    %v917 = vunpack.c.l.b16 %v852
    %v918 = vunpack.c.l.b16 %v853
    %v919 = vunpack.c.l.b16 %v854
    %v920 = vunpack.c.l.b16 %v855
    %v921 = vunpack.c.l.b16 %v856
    %v922 = vunpack.c.l.b16 %v857
    %v923 = vunpack.c.l.b16 %v858
    %v924 = vunpack.c.l.b16 %v859
    %v925 = vunpack.c.l.b16 %v860
    %v926 = vunpack.c.l.b16 %v861
    %v927 = vunpack.c.l.b16 %v862
    %v928 = vunpack.c.l.b16 %v863
    %v929 = vunpack.c.l.b16 %v864
    %v930 = vunpack.c.l.b16 %v865
    %v931 = vunpack.c.l.b16 %v866
    %v932 = vunpack.c.l.b16 %v867
    %v933 = vunpack.c.l.b16 %v868
    %v934 = vunpack.c.l.b16 %v869
    %v935 = vunpack.c.l.b16 %v870
    %v936 = vunpack.c.l.b16 %v871
    %v937 = vunpack.c.l.b16 %v872
    %v938 = vpack.c.b16 %v907, %v906
    %v939 = vpack.c.b16 %v909, %v908
    %v940 = vpack.c.b16 %v911, %v910
    %v941 = vpack.c.b16 %v913, %v912
    %v942 = vpack.c.b16 %v915, %v914
    %v943 = vpack.c.b16 %v917, %v916
    %v944 = vpack.c.b16 %v919, %v918
    %v945 = vpack.c.b16 %v921, %v920
    %v946 = vpack.c.b16 %v923, %v922
    %v947 = vpack.c.b16 %v925, %v924
    %v948 = vpack.c.b16 %v927, %v926
    %v949 = vpack.c.b16 %v929, %v928
    %v950 = vpack.c.b16 %v931, %v930
    %v951 = vpack.c.b16 %v933, %v932
    %v952 = vpack.c.b16 %v935, %v934
    %v953 = vpack.c.b16 %v937, %v936
    %970 = vmatpush.bf16.msra.mxu0 %v945
    %971 = vmatpush.bf16.msra.mxu0 %v944
    %972 = vmatpush.bf16.msra.mxu0 %v943
    %973 = vmatpush.bf16.msra.mxu0 %v942
    %974 = vmatpush.bf16.msra.mxu0 %v941
    %975 = vmatpush.bf16.msra.mxu0 %v940
    %976 = vmatpush.bf16.msra.mxu0 %v939
    %977 = vmatpush.bf16.msra.mxu0 %v938
    %978 = vmatmul.bf16.gmra.mxu0 %v839
    %v979 = vpop.f32.mrf.mxu0
    %v980 = vadd.f32 %v873, %v979
    %v981 = vpop.f32.mrf.mxu0
    %982 = vdwg.mxu0
    %983 = vmatpush.bf16.msra.mxu0 %v953
    %984 = vmatpush.bf16.msra.mxu0 %v952
    %985 = vmatpush.bf16.msra.mxu0 %v951
    %986 = vmatpush.bf16.msra.mxu0 %v950
    %987 = vmatpush.bf16.msra.mxu0 %v949
    %988 = vmatpush.bf16.msra.mxu0 %v948
    %989 = vmatpush.bf16.msra.mxu0 %v947
    %990 = vmatpush.bf16.msra.mxu0 %v946
    %991 = vmatmul.bf16.gmra.mxu0 %v840
    %v992 = vpop.f32.mrf.mxu0
    %v993 = vadd.f32 %v980, %v992
    %v994 = vpop.f32.mrf.mxu0
    %995 = vdwg.mxu0
    %v996 = vmax.f32 %v993, 0.0
    %v997 = vpack.c.bf16 %v996, %v996
    %v998 = vld [vmem:[%s3] sm:$0xf]
    %v999 = vld [vmem:[%s3 + $0x4] sm:$0xf]
    %v1000 = vld [vmem:[%s3 + $0x8] sm:$0xf]
    %v1001 = vld [vmem:[%s3 + $0xc] sm:$0xf]
    %v1002 = vld [vmem:[%s3 + $0x10] sm:$0xf]
    %v1003 = vld [vmem:[%s3 + $0x14] sm:$0xf]
    %v1004 = vld [vmem:[%s3 + $0x18] sm:$0xf]
    %v1005 = vld [vmem:[%s3 + $0x1c] sm:$0xf]
    %v1006 = vld [vmem:[%s3 + $0x20] sm:$0xf]
    %v1007 = vld [vmem:[%s3 + $0x24] sm:$0xf]
    %v1008 = vld [vmem:[%s3 + $0x28] sm:$0xf]
    %v1009 = vld [vmem:[%s3 + $0x2c] sm:$0xf]
    %v1010 = vld [vmem:[%s3 + $0x30] sm:$0xf]
    %v1011 = vld [vmem:[%s3 + $0x34] sm:$0xf]
    %v1012 = vld [vmem:[%s3 + $0x38] sm:$0xf]
    %v1013 = vld [vmem:[%s3 + $0x3c] sm:$0xf]
    %v1014 = vld [vmem:[%s11 + $0x2] ss:$0 sm:$0xff]
    %v1031 = vunpack.c.l.b16 %v998
    %v1032 = vunpack.c.l.b16 %v999
    %v1033 = vunpack.c.l.b16 %v1000
    %v1034 = vunpack.c.l.b16 %v1001
    %v1035 = vunpack.c.l.b16 %v1002
    %v1036 = vunpack.c.l.b16 %v1003
    %v1037 = vunpack.c.l.b16 %v1004
    %v1038 = vunpack.c.l.b16 %v1005
    %v1039 = vunpack.c.l.b16 %v1006
    %v1040 = vunpack.c.l.b16 %v1007
    %v1041 = vunpack.c.l.b16 %v1008
    %v1042 = vunpack.c.l.b16 %v1009
    %v1043 = vunpack.c.l.b16 %v1010
    %v1044 = vunpack.c.l.b16 %v1011
    %v1045 = vunpack.c.l.b16 %v1012
    %v1046 = vunpack.c.l.b16 %v1013
    %v1047 = vpack.c.b16 %v1032, %v1031
    %v1048 = vpack.c.b16 %v1034, %v1033
    %v1049 = vpack.c.b16 %v1036, %v1035
    %v1050 = vpack.c.b16 %v1038, %v1037
    %v1051 = vpack.c.b16 %v1040, %v1039
    %v1052 = vpack.c.b16 %v1042, %v1041
    %v1053 = vpack.c.b16 %v1044, %v1043
    %v1054 = vpack.c.b16 %v1046, %v1045
    %1063 = vmatpush.bf16.msra.mxu0 %v1054
    %1064 = vmatpush.bf16.msra.mxu0 %v1053
    %1065 = vmatpush.bf16.msra.mxu0 %v1052
    %1066 = vmatpush.bf16.msra.mxu0 %v1051
    %1067 = vmatpush.bf16.msra.mxu0 %v1050
    %1068 = vmatpush.bf16.msra.mxu0 %v1049
    %1069 = vmatpush.bf16.msra.mxu0 %v1048
    %1070 = vmatpush.bf16.msra.mxu0 %v1047
    %1071 = vmatmul.bf16.gmra.mxu0 %v997
    %v1072 = vpop.f32.mrf.mxu0
    %v1073 = vadd.f32 %v1014, %v1072
    %v1074 = vpop.f32.mrf.mxu0
    %1075 = vdwg.mxu0
    %v1076 = vmax.f32 %v1073, 0.0
    %v1077 = vpack.c.bf16 %v1076, %v1076
    %v1078 = vld [vmem:[%s4] sm:$0xf]
    %v1079 = vld [vmem:[%s4 + $0x4] sm:$0xf]
    %v1080 = vld [vmem:[%s4 + $0x8] sm:$0xf]
    %v1081 = vld [vmem:[%s4 + $0xc] sm:$0xf]
    %v1082 = vld [vmem:[%s4 + $0x10] sm:$0xf]
    %v1083 = vld [vmem:[%s4 + $0x14] sm:$0xf]
    %v1084 = vld [vmem:[%s4 + $0x18] sm:$0xf]
    %v1085 = vld [vmem:[%s4 + $0x1c] sm:$0xf]
    %v1086 = vld [vmem:[%s11 + $0x3] ss:$0 sm:$0xff]
    %v1095 = vunpack.c.l.b16 %v1078
    %v1096 = vunpack.c.l.b16 %v1079
    %v1097 = vunpack.c.l.b16 %v1080
    %v1098 = vunpack.c.l.b16 %v1081
    %v1099 = vunpack.c.l.b16 %v1082
    %v1100 = vunpack.c.l.b16 %v1083
    %v1101 = vunpack.c.l.b16 %v1084
    %v1102 = vunpack.c.l.b16 %v1085
    %v1103 = vpack.c.b16 %v1096, %v1095
    %v1104 = vpack.c.b16 %v1098, %v1097
    %v1105 = vpack.c.b16 %v1100, %v1099
    %v1106 = vpack.c.b16 %v1102, %v1101
    %vm1111 = vcmask 523264
    %v1113 = vsel %vm1111, %v1077, 0
    %1115 = vmatpush.bf16.msra.mxu0 0
    %1116 = vmatpush.bf16.msra.mxu0 0
    %1117 = vmatpush.bf16.msra.mxu0 0
    %1118 = vmatpush.bf16.msra.mxu0 0
    %1119 = vmatpush.bf16.msra.mxu0 %v1106
    %1120 = vmatpush.bf16.msra.mxu0 %v1105
    %1121 = vmatpush.bf16.msra.mxu0 %v1104
    %1122 = vmatpush.bf16.msra.mxu0 %v1103
    %1123 = vmatmul.bf16.gmra.mxu0 %v1113
    %v1124 = vpop.f32.mrf.mxu0
    %v1125 = vadd.f32 %v1086, %v1124
    %v1126 = vpop.f32.mrf.mxu0
    %1127 = vdwg.mxu0
    %v1128 = vmax.f32 %v1125, 0.0
    %v1129 = vpack.c.bf16 %v1128, %v1128
    %v1130 = vld [vmem:[%s5] sm:$0xf]
    %v1131 = vld [vmem:[%s5 + $0x4] sm:$0xf]
    %v1132 = vld [vmem:[%s5 + $0x8] sm:$0xf]
    %v1133 = vld [vmem:[%s5 + $0xc] sm:$0xf]
    %v1134 = vld [vmem:[%s11 + $0x4] ss:$0 sm:$0xff]
    %v1139 = vunpack.c.l.b16 %v1130
    %v1140 = vunpack.c.l.b16 %v1131
    %v1141 = vunpack.c.l.b16 %v1132
    %v1142 = vunpack.c.l.b16 %v1133
    %v1143 = vpack.c.b16 %v1140, %v1139
    %v1144 = vpack.c.b16 %v1142, %v1141
    %vm1147 = vcmask 261120
    %v1149 = vsel %vm1147, %v1129, 0
    %1151 = vmatpush.bf16.msra.mxu0 0
    %1152 = vmatpush.bf16.msra.mxu0 0
    %1153 = vmatpush.bf16.msra.mxu0 0
    %1154 = vmatpush.bf16.msra.mxu0 0
    %1155 = vmatpush.bf16.msra.mxu0 0
    %1156 = vmatpush.bf16.msra.mxu0 0
    %1157 = vmatpush.bf16.msra.mxu0 %v1144
    %1158 = vmatpush.bf16.msra.mxu0 %v1143
    %1159 = vmatmul.bf16.gmra.mxu0 %v1149
    %v1160 = vpop.f32.mrf.mxu0
    %v1161 = vadd.f32 %v1134, %v1160
    %v1162 = vpop.f32.mrf.mxu0
    %1163 = vdwg.mxu0
    %v1164 = vmax.f32 %v1161, 0.0
    %v1165 = vpack.c.bf16 %v1164, %v1164
    %v1166 = vld [vmem:[%s6] sm:$0xf]
    %v1167 = vld [vmem:[%s6 + $0x4] sm:$0xf]
    %v1168 = vld [vmem:[%s11 + $0x5] ss:$0 sm:$0xff]
    %v1171 = vunpack.c.l.b16 %v1166
    %v1172 = vunpack.c.l.b16 %v1167
    %v1173 = vpack.c.b16 %v1172, %v1171
    %v1176 = vsel %vm651, %v1165, 0
    %1178 = vmatpush.bf16.msra.mxu0 0
    %1179 = vmatpush.bf16.msra.mxu0 0
    %1180 = vmatpush.bf16.msra.mxu0 0
    %1181 = vmatpush.bf16.msra.mxu0 0
    %1182 = vmatpush.bf16.msra.mxu0 0
    %1183 = vmatpush.bf16.msra.mxu0 0
    %1184 = vmatpush.bf16.msra.mxu0 0
    %1185 = vmatpush.bf16.msra.mxu0 %v1173
    %1186 = vmatmul.bf16.gmra.mxu0 %v1176
    %v1187 = vpop.f32.mrf.mxu0
    %v1188 = vadd.f32 %v1168, %v1187
    %v1189 = vpop.f32.mrf.mxu0
    %1190 = vdwg.mxu0
    %v1191 = vmax.f32 %v1188, 0.0
    %v1192 = vpack.c.bf16 %v1191, %v1191
    %v1193 = vld [vmem:[%s7] sm:$0xf]
    %v1194 = vld [vmem:[%s7 + $0x4] sm:$0xf]
    %v1195 = vld [vmem:[%s7 + $0x8] sm:$0xf]
    %v1196 = vld [vmem:[%s7 + $0xc] sm:$0xf]
    %v1197 = vld [vmem:[%s11 + $0x6] ss:$0 sm:$0xff]
    %v1202 = vunpack.c.l.b16 %v1193
    %v1203 = vunpack.c.l.b16 %v1194
    %v1204 = vunpack.c.l.b16 %v1195
    %v1205 = vunpack.c.l.b16 %v1196
    %v1206 = vpack.c.b16 %v1203, %v1202
    %v1207 = vpack.c.b16 %v1205, %v1204
    %v1211 = vsel %vm1147, %v1192, 0
    %1213 = vmatpush.bf16.msra.mxu0 0
    %1214 = vmatpush.bf16.msra.mxu0 0
    %1215 = vmatpush.bf16.msra.mxu0 0
    %1216 = vmatpush.bf16.msra.mxu0 0
    %1217 = vmatpush.bf16.msra.mxu0 0
    %1218 = vmatpush.bf16.msra.mxu0 0
    %1219 = vmatpush.bf16.msra.mxu0 %v1207
    %1220 = vmatpush.bf16.msra.mxu0 %v1206
    %1221 = vmatmul.bf16.gmra.mxu0 %v1211
    %v1222 = vpop.f32.mrf.mxu0
    %v1223 = vadd.f32 %v1197, %v1222
    %v1224 = vpop.f32.mrf.mxu0
    %1225 = vdwg.mxu0
    %v1226 = vmax.f32 %v1223, 0.0
    %v1227 = vpack.c.bf16 %v1226, %v1226
    %v1228 = vld [vmem:[%s8] sm:$0xf]
    %v1229 = vld [vmem:[%s8 + $0x4] sm:$0xf]
    %v1230 = vld [vmem:[%s8 + $0x8] sm:$0xf]
    %v1231 = vld [vmem:[%s8 + $0xc] sm:$0xf]
    %v1232 = vld [vmem:[%s8 + $0x10] sm:$0xf]
    %v1233 = vld [vmem:[%s8 + $0x14] sm:$0xf]
    %v1234 = vld [vmem:[%s8 + $0x18] sm:$0xf]
    %v1235 = vld [vmem:[%s8 + $0x1c] sm:$0xf]
    %v1236 = vld [vmem:[%s11 + $0x7] ss:$0 sm:$0xff]
    %v1245 = vunpack.c.l.b16 %v1228
    %v1246 = vunpack.c.l.b16 %v1229
    %v1247 = vunpack.c.l.b16 %v1230
    %v1248 = vunpack.c.l.b16 %v1231
    %v1249 = vunpack.c.l.b16 %v1232
    %v1250 = vunpack.c.l.b16 %v1233
    %v1251 = vunpack.c.l.b16 %v1234
    %v1252 = vunpack.c.l.b16 %v1235
    %v1253 = vpack.c.b16 %v1246, %v1245
    %v1254 = vpack.c.b16 %v1248, %v1247
    %v1255 = vpack.c.b16 %v1250, %v1249
    %v1256 = vpack.c.b16 %v1252, %v1251
    %v1262 = vsel %vm1111, %v1227, 0
    %1264 = vmatpush.bf16.msra.mxu0 0
    %1265 = vmatpush.bf16.msra.mxu0 0
    %1266 = vmatpush.bf16.msra.mxu0 0
    %1267 = vmatpush.bf16.msra.mxu0 0
    %1268 = vmatpush.bf16.msra.mxu0 %v1256
    %1269 = vmatpush.bf16.msra.mxu0 %v1255
    %1270 = vmatpush.bf16.msra.mxu0 %v1254
    %1271 = vmatpush.bf16.msra.mxu0 %v1253
    %1272 = vmatmul.bf16.gmra.mxu0 %v1262
    %v1273 = vpop.f32.mrf.mxu0
    %v1274 = vadd.f32 %v1236, %v1273
    %v1275 = vpop.f32.mrf.mxu0
    %1276 = vdwg.mxu0
    %v1277 = vmax.f32 %v1274, 0.0
    %v1278 = vpack.c.bf16 %v1277, %v1277
    %v1279 = vld [vmem:[%s9] sm:$0xff]
    %v1280 = vld [vmem:[%s9 + $0x8] sm:$0xff]
    %v1281 = vld [vmem:[%s9 + $0x10] sm:$0xff]
    %v1282 = vld [vmem:[%s9 + $0x18] sm:$0xff]
    %v1283 = vld [vmem:[%s9 + $0x20] sm:$0xff]
    %v1284 = vld [vmem:[%s9 + $0x28] sm:$0xff]
    %v1285 = vld [vmem:[%s9 + $0x30] sm:$0xff]
    %v1286 = vld [vmem:[%s9 + $0x38] sm:$0xff]
    %v1287 = vld [vmem:[%s9 + $0x40] sm:$0xff]
    %v1288 = vld [vmem:[%s9 + $0x48] sm:$0xff]
    %v1289 = vld [vmem:[%s9 + $0x50] sm:$0xff]
    %v1290 = vld [vmem:[%s9 + $0x58] sm:$0xff]
    %v1291 = vld [vmem:[%s9 + $0x60] sm:$0xff]
    %v1292 = vld [vmem:[%s9 + $0x68] sm:$0xff]
    %v1293 = vld [vmem:[%s9 + $0x70] sm:$0xff]
    %v1294 = vld [vmem:[%s9 + $0x78] sm:$0xff]
    %s1295 = scalar_lea.vmem %s11, 56
    %v1296 = vld [vmem:[%s1295] ss:$8 sm:$0x3]
    %v1298 = vperm.slane %v1296, 0
    %v1299 = vperm.slane %v1296, 1
    %v1318 = vunpack.c.l.b16 %v1279
    %v1319 = vunpack.c.h.b16 %v1279
    %v1320 = vunpack.c.l.b16 %v1280
    %v1321 = vunpack.c.h.b16 %v1280
    %v1322 = vunpack.c.l.b16 %v1281
    %v1323 = vunpack.c.h.b16 %v1281
    %v1324 = vunpack.c.l.b16 %v1282
    %v1325 = vunpack.c.h.b16 %v1282
    %v1326 = vunpack.c.l.b16 %v1283
    %v1327 = vunpack.c.h.b16 %v1283
    %v1328 = vunpack.c.l.b16 %v1284
    %v1329 = vunpack.c.h.b16 %v1284
    %v1330 = vunpack.c.l.b16 %v1285
    %v1331 = vunpack.c.h.b16 %v1285
    %v1332 = vunpack.c.l.b16 %v1286
    %v1333 = vunpack.c.h.b16 %v1286
    %v1334 = vunpack.c.l.b16 %v1287
    %v1335 = vunpack.c.h.b16 %v1287
    %v1336 = vunpack.c.l.b16 %v1288
    %v1337 = vunpack.c.h.b16 %v1288
    %v1338 = vunpack.c.l.b16 %v1289
    %v1339 = vunpack.c.h.b16 %v1289
    %v1340 = vunpack.c.l.b16 %v1290
    %v1341 = vunpack.c.h.b16 %v1290
    %v1342 = vunpack.c.l.b16 %v1291
    %v1343 = vunpack.c.h.b16 %v1291
    %v1344 = vunpack.c.l.b16 %v1292
    %v1345 = vunpack.c.h.b16 %v1292
    %v1346 = vunpack.c.l.b16 %v1293
    %v1347 = vunpack.c.h.b16 %v1293
    %v1348 = vunpack.c.l.b16 %v1294
    %v1349 = vunpack.c.h.b16 %v1294
    %v1350 = vpack.c.b16 %v1320, %v1318
    %v1351 = vpack.c.b16 %v1321, %v1319
    %v1352 = vpack.c.b16 %v1324, %v1322
    %v1353 = vpack.c.b16 %v1325, %v1323
    %v1354 = vpack.c.b16 %v1328, %v1326
    %v1355 = vpack.c.b16 %v1329, %v1327
    %v1356 = vpack.c.b16 %v1332, %v1330
    %v1357 = vpack.c.b16 %v1333, %v1331
    %v1358 = vpack.c.b16 %v1336, %v1334
    %v1359 = vpack.c.b16 %v1337, %v1335
    %v1360 = vpack.c.b16 %v1340, %v1338
    %v1361 = vpack.c.b16 %v1341, %v1339
    %v1362 = vpack.c.b16 %v1344, %v1342
    %v1363 = vpack.c.b16 %v1345, %v1343
    %v1364 = vpack.c.b16 %v1348, %v1346
    %v1365 = vpack.c.b16 %v1349, %v1347
    %1382 = vmatpush.bf16.msra.mxu0 %v1364
    %1383 = vmatpush.bf16.msra.mxu0 %v1362
    %1384 = vmatpush.bf16.msra.mxu0 %v1360
    %1385 = vmatpush.bf16.msra.mxu0 %v1358
    %1386 = vmatpush.bf16.msra.mxu0 %v1356
    %1387 = vmatpush.bf16.msra.mxu0 %v1354
    %1388 = vmatpush.bf16.msra.mxu0 %v1352
    %1389 = vmatpush.bf16.msra.mxu0 %v1350
    %1390 = vmatmul.bf16.gmra.mxu0 %v1278
    %v1391 = vpop.f32.mrf.mxu0
    %v1392 = vadd.f32 %v1298, %v1391
    %v1393 = vpop.f32.mrf.mxu0
    %1394 = vdwg.mxu0
    %1395 = vmatpush.bf16.msra.mxu0 %v1365
    %1396 = vmatpush.bf16.msra.mxu0 %v1363
    %1397 = vmatpush.bf16.msra.mxu0 %v1361
    %1398 = vmatpush.bf16.msra.mxu0 %v1359
    %1399 = vmatpush.bf16.msra.mxu0 %v1357
    %1400 = vmatpush.bf16.msra.mxu0 %v1355
    %1401 = vmatpush.bf16.msra.mxu0 %v1353
    %1402 = vmatpush.bf16.msra.mxu0 %v1351
    %1403 = vmatmul.bf16.gmra.mxu0 %v1278
    %v1404 = vpop.f32.mrf.mxu0
    %v1405 = vadd.f32 %v1299, %v1404
    %v1406 = vpop.f32.mrf.mxu0
    %1407 = vdwg.mxu0
    %v1408 = vmax.f32 %v1392, 0.0
    %v1409 = vmax.f32 %v1405, 0.0
    %v1410 = vpack.c.bf16 %v1408, %v1408
    %v1411 = vpack.c.bf16 %v1409, %v1409
    %v1412 = vld [vmem:[%s10] sm:$0xff]
    %v1413 = vld [vmem:[%s10 + $0x8] sm:$0xff]
    %v1414 = vld [vmem:[%s10 + $0x10] sm:$0xff]
    %v1415 = vld [vmem:[%s10 + $0x18] sm:$0xf]
    %v1416 = vld [vmem:[%s10 + $0x1c] sm:$0xff]
    %v1417 = vld [vmem:[%s10 + $0x24] sm:$0xff]
    %v1418 = vld [vmem:[%s10 + $0x2c] sm:$0xff]
    %v1419 = vld [vmem:[%s10 + $0x34] sm:$0xf]
    %v1420 = vld [vmem:[%s10 + $0x38] sm:$0xff]
    %v1421 = vld [vmem:[%s10 + $0x40] sm:$0xff]
    %v1422 = vld [vmem:[%s10 + $0x48] sm:$0xff]
    %v1423 = vld [vmem:[%s10 + $0x50] sm:$0xf]
    %v1424 = vld [vmem:[%s10 + $0x54] sm:$0xff]
    %v1425 = vld [vmem:[%s10 + $0x5c] sm:$0xff]
    %v1426 = vld [vmem:[%s10 + $0x64] sm:$0xff]
    %v1427 = vld [vmem:[%s10 + $0x6c] sm:$0xf]
    %v1428 = vld [vmem:[%s10 + $0x70] sm:$0xff]
    %v1429 = vld [vmem:[%s10 + $0x78] sm:$0xff]
    %v1430 = vld [vmem:[%s10 + $0x80] sm:$0xff]
    %v1431 = vld [vmem:[%s10 + $0x88] sm:$0xf]
    %v1432 = vld [vmem:[%s10 + $0x8c] sm:$0xff]
    %v1433 = vld [vmem:[%s10 + $0x94] sm:$0xff]
    %v1434 = vld [vmem:[%s10 + $0x9c] sm:$0xff]
    %v1435 = vld [vmem:[%s10 + $0xa4] sm:$0xf]
    %v1436 = vld [vmem:[%s10 + $0xa8] sm:$0xff]
    %v1437 = vld [vmem:[%s10 + $0xb0] sm:$0xff]
    %v1438 = vld [vmem:[%s10 + $0xb8] sm:$0xff]
    %v1439 = vld [vmem:[%s10 + $0xc0] sm:$0xf]
    %v1440 = vld [vmem:[%s10 + $0xc4] sm:$0xff]
    %v1441 = vld [vmem:[%s10 + $0xcc] sm:$0xff]
    %v1442 = vld [vmem:[%s10 + $0xd4] sm:$0xff]
    %v1443 = vld [vmem:[%s10 + $0xdc] sm:$0xf]
    %v1444 = vld [vmem:[%s10 + $0xe0] sm:$0xff]
    %v1445 = vld [vmem:[%s10 + $0xe8] sm:$0xff]
    %v1446 = vld [vmem:[%s10 + $0xf0] sm:$0xff]
    %v1447 = vld [vmem:[%s10 + $0xf8] sm:$0xf]
    %v1448 = vld [vmem:[%s10 + $0xfc] sm:$0xff]
    %v1449 = vld [vmem:[%s10 + $0x104] sm:$0xff]
    %v1450 = vld [vmem:[%s10 + $0x10c] sm:$0xff]
    %v1451 = vld [vmem:[%s10 + $0x114] sm:$0xf]
    %v1452 = vld [vmem:[%s10 + $0x118] sm:$0xff]
    %v1453 = vld [vmem:[%s10 + $0x120] sm:$0xff]
    %v1454 = vld [vmem:[%s10 + $0x128] sm:$0xff]
    %v1455 = vld [vmem:[%s10 + $0x130] sm:$0xf]
    %v1456 = vld [vmem:[%s10 + $0x134] sm:$0xff]
    %v1457 = vld [vmem:[%s10 + $0x13c] sm:$0xff]
    %v1458 = vld [vmem:[%s10 + $0x144] sm:$0xff]
    %v1459 = vld [vmem:[%s10 + $0x14c] sm:$0xf]
    %v1460 = vld [vmem:[%s10 + $0x150] sm:$0xff]
    %v1461 = vld [vmem:[%s10 + $0x158] sm:$0xff]
    %v1462 = vld [vmem:[%s10 + $0x160] sm:$0xff]
    %v1463 = vld [vmem:[%s10 + $0x168] sm:$0xf]
    %v1464 = vld [vmem:[%s10 + $0x16c] sm:$0xff]
    %v1465 = vld [vmem:[%s10 + $0x174] sm:$0xff]
    %v1466 = vld [vmem:[%s10 + $0x17c] sm:$0xff]
    %v1467 = vld [vmem:[%s10 + $0x184] sm:$0xf]
    %v1468 = vld [vmem:[%s10 + $0x188] sm:$0xff]
    %v1469 = vld [vmem:[%s10 + $0x190] sm:$0xff]
    %v1470 = vld [vmem:[%s10 + $0x198] sm:$0xff]
    %v1471 = vld [vmem:[%s10 + $0x1a0] sm:$0xf]
    %v1472 = vld [vmem:[%s10 + $0x1a4] sm:$0xff]
    %v1473 = vld [vmem:[%s10 + $0x1ac] sm:$0xff]
    %v1474 = vld [vmem:[%s10 + $0x1b4] sm:$0xff]
    %v1475 = vld [vmem:[%s10 + $0x1bc] sm:$0xf]
    %v1476 = vld [vmem:[%s10 + $0x1c0] sm:$0xff]
    %v1477 = vld [vmem:[%s10 + $0x1c8] sm:$0xff]
    %v1478 = vld [vmem:[%s10 + $0x1d0] sm:$0xff]
    %v1479 = vld [vmem:[%s10 + $0x1d8] sm:$0xf]
    %v1480 = vld [vmem:[%s10 + $0x1dc] sm:$0xff]
    %v1481 = vld [vmem:[%s10 + $0x1e4] sm:$0xff]
    %v1482 = vld [vmem:[%s10 + $0x1ec] sm:$0xff]
    %v1483 = vld [vmem:[%s10 + $0x1f4] sm:$0xf]
    %v1484 = vld [vmem:[%s10 + $0x1f8] sm:$0xff]
    %v1485 = vld [vmem:[%s10 + $0x200] sm:$0xff]
    %v1486 = vld [vmem:[%s10 + $0x208] sm:$0xff]
    %v1487 = vld [vmem:[%s10 + $0x210] sm:$0xf]
    %v1488 = vld [vmem:[%s10 + $0x214] sm:$0xff]
    %v1489 = vld [vmem:[%s10 + $0x21c] sm:$0xff]
    %v1490 = vld [vmem:[%s10 + $0x224] sm:$0xff]
    %v1491 = vld [vmem:[%s10 + $0x22c] sm:$0xf]
    %v1492 = vld [vmem:[%s10 + $0x230] sm:$0xff]
    %v1493 = vld [vmem:[%s10 + $0x238] sm:$0xff]
    %v1494 = vld [vmem:[%s10 + $0x240] sm:$0xff]
    %v1495 = vld [vmem:[%s10 + $0x248] sm:$0xf]
    %v1496 = vld [vmem:[%s10 + $0x24c] sm:$0xff]
    %v1497 = vld [vmem:[%s10 + $0x254] sm:$0xff]
    %v1498 = vld [vmem:[%s10 + $0x25c] sm:$0xff]
    %v1499 = vld [vmem:[%s10 + $0x264] sm:$0xf]
    %v1500 = vld [vmem:[%s10 + $0x268] sm:$0xff]
    %v1501 = vld [vmem:[%s10 + $0x270] sm:$0xff]
    %v1502 = vld [vmem:[%s10 + $0x278] sm:$0xff]
    %v1503 = vld [vmem:[%s10 + $0x280] sm:$0xf]
    %v1504 = vld [vmem:[%s10 + $0x284] sm:$0xff]
    %v1505 = vld [vmem:[%s10 + $0x28c] sm:$0xff]
    %v1506 = vld [vmem:[%s10 + $0x294] sm:$0xff]
    %v1507 = vld [vmem:[%s10 + $0x29c] sm:$0xf]
    %v1508 = vld [vmem:[%s10 + $0x2a0] sm:$0xff]
    %v1509 = vld [vmem:[%s10 + $0x2a8] sm:$0xff]
    %v1510 = vld [vmem:[%s10 + $0x2b0] sm:$0xff]
    %v1511 = vld [vmem:[%s10 + $0x2b8] sm:$0xf]
    %v1512 = vld [vmem:[%s10 + $0x2bc] sm:$0xff]
    %v1513 = vld [vmem:[%s10 + $0x2c4] sm:$0xff]
    %v1514 = vld [vmem:[%s10 + $0x2cc] sm:$0xff]
    %v1515 = vld [vmem:[%s10 + $0x2d4] sm:$0xf]
    %v1516 = vld [vmem:[%s10 + $0x2d8] sm:$0xff]
    %v1517 = vld [vmem:[%s10 + $0x2e0] sm:$0xff]
    %v1518 = vld [vmem:[%s10 + $0x2e8] sm:$0xff]
    %v1519 = vld [vmem:[%s10 + $0x2f0] sm:$0xf]
    %v1520 = vld [vmem:[%s10 + $0x2f4] sm:$0xff]
    %v1521 = vld [vmem:[%s10 + $0x2fc] sm:$0xff]
    %v1522 = vld [vmem:[%s10 + $0x304] sm:$0xff]
    %v1523 = vld [vmem:[%s10 + $0x30c] sm:$0xf]
    %v1524 = vld [vmem:[%s10 + $0x310] sm:$0xff]
    %v1525 = vld [vmem:[%s10 + $0x318] sm:$0xff]
    %v1526 = vld [vmem:[%s10 + $0x320] sm:$0xff]
    %v1527 = vld [vmem:[%s10 + $0x328] sm:$0xf]
    %v1528 = vld [vmem:[%s10 + $0x32c] sm:$0xff]
    %v1529 = vld [vmem:[%s10 + $0x334] sm:$0xff]
    %v1530 = vld [vmem:[%s10 + $0x33c] sm:$0xff]
    %v1531 = vld [vmem:[%s10 + $0x344] sm:$0xf]
    %v1532 = vld [vmem:[%s10 + $0x348] sm:$0xff]
    %v1533 = vld [vmem:[%s10 + $0x350] sm:$0xff]
    %v1534 = vld [vmem:[%s10 + $0x358] sm:$0xff]
    %v1535 = vld [vmem:[%s10 + $0x360] sm:$0xf]
    %v1536 = vld [vmem:[%s10 + $0x364] sm:$0xff]
    %v1537 = vld [vmem:[%s10 + $0x36c] sm:$0xff]
    %v1538 = vld [vmem:[%s10 + $0x374] sm:$0xff]
    %v1539 = vld [vmem:[%s10 + $0x37c] sm:$0xf]
    %s1540 = scalar_lea.vmem %s11, 57
    %v1541 = vld [vmem:[%s1540] ss:$8 sm:$0xf]
    %v1542 = vld [vmem:[%s1540] ss:$8 sm:$0x70]
    %v1543 = vor.u32 %v1541, %v1542
    %v1545 = vperm.slane %v1543, 0
    %v1546 = vperm.slane %v1543, 1
    %v1547 = vperm.slane %v1543, 2
    %v1548 = vperm.slane %v1543, 3
    %v1549 = vperm.slane %v1543, 4
    %v1550 = vperm.slane %v1543, 5
    %v1551 = vperm.slane %v1543, 6
    %v1687 = vunpack.c.l.b16 %v1412
    %v1688 = vunpack.c.h.b16 %v1412
    %v1689 = vunpack.c.l.b16 %v1413
    %v1690 = vunpack.c.h.b16 %v1413
    %v1691 = vunpack.c.l.b16 %v1414
    %v1692 = vunpack.c.h.b16 %v1414
    %v1693 = vunpack.c.l.b16 %v1415
    %v1694 = vunpack.c.l.b16 %v1416
    %v1695 = vunpack.c.h.b16 %v1416
    %v1696 = vunpack.c.l.b16 %v1417
    %v1697 = vunpack.c.h.b16 %v1417
    %v1698 = vunpack.c.l.b16 %v1418
    %v1699 = vunpack.c.h.b16 %v1418
    %v1700 = vunpack.c.l.b16 %v1419
    %v1701 = vunpack.c.l.b16 %v1420
    %v1702 = vunpack.c.h.b16 %v1420
    %v1703 = vunpack.c.l.b16 %v1421
    %v1704 = vunpack.c.h.b16 %v1421
    %v1705 = vunpack.c.l.b16 %v1422
    %v1706 = vunpack.c.h.b16 %v1422
    %v1707 = vunpack.c.l.b16 %v1423
    %v1708 = vunpack.c.l.b16 %v1424
    %v1709 = vunpack.c.h.b16 %v1424
    %v1710 = vunpack.c.l.b16 %v1425
    %v1711 = vunpack.c.h.b16 %v1425
    %v1712 = vunpack.c.l.b16 %v1426
    %v1713 = vunpack.c.h.b16 %v1426
    %v1714 = vunpack.c.l.b16 %v1427
    %v1715 = vunpack.c.l.b16 %v1428
    %v1716 = vunpack.c.h.b16 %v1428
    %v1717 = vunpack.c.l.b16 %v1429
    %v1718 = vunpack.c.h.b16 %v1429
    %v1719 = vunpack.c.l.b16 %v1430
    %v1720 = vunpack.c.h.b16 %v1430
    %v1721 = vunpack.c.l.b16 %v1431
    %v1722 = vunpack.c.l.b16 %v1432
    %v1723 = vunpack.c.h.b16 %v1432
    %v1724 = vunpack.c.l.b16 %v1433
    %v1725 = vunpack.c.h.b16 %v1433
    %v1726 = vunpack.c.l.b16 %v1434
    %v1727 = vunpack.c.h.b16 %v1434
    %v1728 = vunpack.c.l.b16 %v1435
    %v1729 = vunpack.c.l.b16 %v1436
    %v1730 = vunpack.c.h.b16 %v1436
    %v1731 = vunpack.c.l.b16 %v1437
    %v1732 = vunpack.c.h.b16 %v1437
    %v1733 = vunpack.c.l.b16 %v1438
    %v1734 = vunpack.c.h.b16 %v1438
    %v1735 = vunpack.c.l.b16 %v1439
    %v1736 = vunpack.c.l.b16 %v1440
    %v1737 = vunpack.c.h.b16 %v1440
    %v1738 = vunpack.c.l.b16 %v1441
    %v1739 = vunpack.c.h.b16 %v1441
    %v1740 = vunpack.c.l.b16 %v1442
    %v1741 = vunpack.c.h.b16 %v1442
    %v1742 = vunpack.c.l.b16 %v1443
    %v1743 = vunpack.c.l.b16 %v1444
    %v1744 = vunpack.c.h.b16 %v1444
    %v1745 = vunpack.c.l.b16 %v1445
    %v1746 = vunpack.c.h.b16 %v1445
    %v1747 = vunpack.c.l.b16 %v1446
    %v1748 = vunpack.c.h.b16 %v1446
    %v1749 = vunpack.c.l.b16 %v1447
    %v1750 = vunpack.c.l.b16 %v1448
    %v1751 = vunpack.c.h.b16 %v1448
    %v1752 = vunpack.c.l.b16 %v1449
    %v1753 = vunpack.c.h.b16 %v1449
    %v1754 = vunpack.c.l.b16 %v1450
    %v1755 = vunpack.c.h.b16 %v1450
    %v1756 = vunpack.c.l.b16 %v1451
    %v1757 = vunpack.c.l.b16 %v1452
    %v1758 = vunpack.c.h.b16 %v1452
    %v1759 = vunpack.c.l.b16 %v1453
    %v1760 = vunpack.c.h.b16 %v1453
    %v1761 = vunpack.c.l.b16 %v1454
    %v1762 = vunpack.c.h.b16 %v1454
    %v1763 = vunpack.c.l.b16 %v1455
    %v1764 = vunpack.c.l.b16 %v1456
    %v1765 = vunpack.c.h.b16 %v1456
    %v1766 = vunpack.c.l.b16 %v1457
    %v1767 = vunpack.c.h.b16 %v1457
    %v1768 = vunpack.c.l.b16 %v1458
    %v1769 = vunpack.c.h.b16 %v1458
    %v1770 = vunpack.c.l.b16 %v1459
    %v1771 = vunpack.c.l.b16 %v1460
    %v1772 = vunpack.c.h.b16 %v1460
    %v1773 = vunpack.c.l.b16 %v1461
    %v1774 = vunpack.c.h.b16 %v1461
    %v1775 = vunpack.c.l.b16 %v1462
    %v1776 = vunpack.c.h.b16 %v1462
    %v1777 = vunpack.c.l.b16 %v1463
    %v1778 = vunpack.c.l.b16 %v1464
    %v1779 = vunpack.c.h.b16 %v1464
    %v1780 = vunpack.c.l.b16 %v1465
    %v1781 = vunpack.c.h.b16 %v1465
    %v1782 = vunpack.c.l.b16 %v1466
    %v1783 = vunpack.c.h.b16 %v1466
    %v1784 = vunpack.c.l.b16 %v1467
    %v1785 = vunpack.c.l.b16 %v1468
    %v1786 = vunpack.c.h.b16 %v1468
    %v1787 = vunpack.c.l.b16 %v1469
    %v1788 = vunpack.c.h.b16 %v1469
    %v1789 = vunpack.c.l.b16 %v1470
    %v1790 = vunpack.c.h.b16 %v1470
    %v1791 = vunpack.c.l.b16 %v1471
    %v1792 = vunpack.c.l.b16 %v1472
    %v1793 = vunpack.c.h.b16 %v1472
    %v1794 = vunpack.c.l.b16 %v1473
    %v1795 = vunpack.c.h.b16 %v1473
    %v1796 = vunpack.c.l.b16 %v1474
    %v1797 = vunpack.c.h.b16 %v1474
    %v1798 = vunpack.c.l.b16 %v1475
    %v1799 = vunpack.c.l.b16 %v1476
    %v1800 = vunpack.c.h.b16 %v1476
    %v1801 = vunpack.c.l.b16 %v1477
    %v1802 = vunpack.c.h.b16 %v1477
    %v1803 = vunpack.c.l.b16 %v1478
    %v1804 = vunpack.c.h.b16 %v1478
    %v1805 = vunpack.c.l.b16 %v1479
    %v1806 = vunpack.c.l.b16 %v1480
    %v1807 = vunpack.c.h.b16 %v1480
    %v1808 = vunpack.c.l.b16 %v1481
    %v1809 = vunpack.c.h.b16 %v1481
    %v1810 = vunpack.c.l.b16 %v1482
    %v1811 = vunpack.c.h.b16 %v1482
    %v1812 = vunpack.c.l.b16 %v1483
    %v1813 = vunpack.c.l.b16 %v1484
    %v1814 = vunpack.c.h.b16 %v1484
    %v1815 = vunpack.c.l.b16 %v1485
    %v1816 = vunpack.c.h.b16 %v1485
    %v1817 = vunpack.c.l.b16 %v1486
    %v1818 = vunpack.c.h.b16 %v1486
    %v1819 = vunpack.c.l.b16 %v1487
    %v1820 = vunpack.c.l.b16 %v1488
    %v1821 = vunpack.c.h.b16 %v1488
    %v1822 = vunpack.c.l.b16 %v1489
    %v1823 = vunpack.c.h.b16 %v1489
    %v1824 = vunpack.c.l.b16 %v1490
    %v1825 = vunpack.c.h.b16 %v1490
    %v1826 = vunpack.c.l.b16 %v1491
    %v1827 = vunpack.c.l.b16 %v1492
    %v1828 = vunpack.c.h.b16 %v1492
    %v1829 = vunpack.c.l.b16 %v1493
    %v1830 = vunpack.c.h.b16 %v1493
    %v1831 = vunpack.c.l.b16 %v1494
    %v1832 = vunpack.c.h.b16 %v1494
    %v1833 = vunpack.c.l.b16 %v1495
    %v1834 = vunpack.c.l.b16 %v1496
    %v1835 = vunpack.c.h.b16 %v1496
    %v1836 = vunpack.c.l.b16 %v1497
    %v1837 = vunpack.c.h.b16 %v1497
    %v1838 = vunpack.c.l.b16 %v1498
    %v1839 = vunpack.c.h.b16 %v1498
    %v1840 = vunpack.c.l.b16 %v1499
    %v1841 = vunpack.c.l.b16 %v1500
    %v1842 = vunpack.c.h.b16 %v1500
    %v1843 = vunpack.c.l.b16 %v1501
    %v1844 = vunpack.c.h.b16 %v1501
    %v1845 = vunpack.c.l.b16 %v1502
    %v1846 = vunpack.c.h.b16 %v1502
    %v1847 = vunpack.c.l.b16 %v1503
    %v1848 = vunpack.c.l.b16 %v1504
    %v1849 = vunpack.c.h.b16 %v1504
    %v1850 = vunpack.c.l.b16 %v1505
    %v1851 = vunpack.c.h.b16 %v1505
    %v1852 = vunpack.c.l.b16 %v1506
    %v1853 = vunpack.c.h.b16 %v1506
    %v1854 = vunpack.c.l.b16 %v1507
    %v1855 = vunpack.c.l.b16 %v1508
    %v1856 = vunpack.c.h.b16 %v1508
    %v1857 = vunpack.c.l.b16 %v1509
    %v1858 = vunpack.c.h.b16 %v1509
    %v1859 = vunpack.c.l.b16 %v1510
    %v1860 = vunpack.c.h.b16 %v1510
    %v1861 = vunpack.c.l.b16 %v1511
    %v1862 = vunpack.c.l.b16 %v1512
    %v1863 = vunpack.c.h.b16 %v1512
    %v1864 = vunpack.c.l.b16 %v1513
    %v1865 = vunpack.c.h.b16 %v1513
    %v1866 = vunpack.c.l.b16 %v1514
    %v1867 = vunpack.c.h.b16 %v1514
    %v1868 = vunpack.c.l.b16 %v1515
    %v1869 = vunpack.c.l.b16 %v1516
    %v1870 = vunpack.c.h.b16 %v1516
    %v1871 = vunpack.c.l.b16 %v1517
    %v1872 = vunpack.c.h.b16 %v1517
    %v1873 = vunpack.c.l.b16 %v1518
    %v1874 = vunpack.c.h.b16 %v1518
    %v1875 = vunpack.c.l.b16 %v1519
    %v1876 = vunpack.c.l.b16 %v1520
    %v1877 = vunpack.c.h.b16 %v1520
    %v1878 = vunpack.c.l.b16 %v1521
    %v1879 = vunpack.c.h.b16 %v1521
    %v1880 = vunpack.c.l.b16 %v1522
    %v1881 = vunpack.c.h.b16 %v1522
    %v1882 = vunpack.c.l.b16 %v1523
    %v1883 = vunpack.c.l.b16 %v1524
    %v1884 = vunpack.c.h.b16 %v1524
    %v1885 = vunpack.c.l.b16 %v1525
    %v1886 = vunpack.c.h.b16 %v1525
    %v1887 = vunpack.c.l.b16 %v1526
    %v1888 = vunpack.c.h.b16 %v1526
    %v1889 = vunpack.c.l.b16 %v1527
    %v1890 = vunpack.c.l.b16 %v1528
    %v1891 = vunpack.c.h.b16 %v1528
    %v1892 = vunpack.c.l.b16 %v1529
    %v1893 = vunpack.c.h.b16 %v1529
    %v1894 = vunpack.c.l.b16 %v1530
    %v1895 = vunpack.c.h.b16 %v1530
    %v1896 = vunpack.c.l.b16 %v1531
    %v1897 = vunpack.c.l.b16 %v1532
    %v1898 = vunpack.c.h.b16 %v1532
    %v1899 = vunpack.c.l.b16 %v1533
    %v1900 = vunpack.c.h.b16 %v1533
    %v1901 = vunpack.c.l.b16 %v1534
    %v1902 = vunpack.c.h.b16 %v1534
    %v1903 = vunpack.c.l.b16 %v1535
    %v1904 = vunpack.c.l.b16 %v1536
    %v1905 = vunpack.c.h.b16 %v1536
    %v1906 = vunpack.c.l.b16 %v1537
    %v1907 = vunpack.c.h.b16 %v1537
    %v1908 = vunpack.c.l.b16 %v1538
    %v1909 = vunpack.c.h.b16 %v1538
    %v1910 = vunpack.c.l.b16 %v1539
    %v1911 = vpack.c.b16 %v1694, %v1687
    %v1912 = vpack.c.b16 %v1695, %v1688
    %v1913 = vpack.c.b16 %v1696, %v1689
    %v1914 = vpack.c.b16 %v1697, %v1690
    %v1915 = vpack.c.b16 %v1698, %v1691
    %v1916 = vpack.c.b16 %v1699, %v1692
    %v1917 = vpack.c.b16 %v1700, %v1693
    %v1918 = vpack.c.b16 %v1708, %v1701
    %v1919 = vpack.c.b16 %v1709, %v1702
    %v1920 = vpack.c.b16 %v1710, %v1703
    %v1921 = vpack.c.b16 %v1711, %v1704
    %v1922 = vpack.c.b16 %v1712, %v1705
    %v1923 = vpack.c.b16 %v1713, %v1706
    %v1924 = vpack.c.b16 %v1714, %v1707
    %v1925 = vpack.c.b16 %v1722, %v1715
    %v1926 = vpack.c.b16 %v1723, %v1716
    %v1927 = vpack.c.b16 %v1724, %v1717
    %v1928 = vpack.c.b16 %v1725, %v1718
    %v1929 = vpack.c.b16 %v1726, %v1719
    %v1930 = vpack.c.b16 %v1727, %v1720
    %v1931 = vpack.c.b16 %v1728, %v1721
    %v1932 = vpack.c.b16 %v1736, %v1729
    %v1933 = vpack.c.b16 %v1737, %v1730
    %v1934 = vpack.c.b16 %v1738, %v1731
    %v1935 = vpack.c.b16 %v1739, %v1732
    %v1936 = vpack.c.b16 %v1740, %v1733
    %v1937 = vpack.c.b16 %v1741, %v1734
    %v1938 = vpack.c.b16 %v1742, %v1735
    %v1939 = vpack.c.b16 %v1750, %v1743
    %v1940 = vpack.c.b16 %v1751, %v1744
    %v1941 = vpack.c.b16 %v1752, %v1745
    %v1942 = vpack.c.b16 %v1753, %v1746
    %v1943 = vpack.c.b16 %v1754, %v1747
    %v1944 = vpack.c.b16 %v1755, %v1748
    %v1945 = vpack.c.b16 %v1756, %v1749
    %v1946 = vpack.c.b16 %v1764, %v1757
    %v1947 = vpack.c.b16 %v1765, %v1758
    %v1948 = vpack.c.b16 %v1766, %v1759
    %v1949 = vpack.c.b16 %v1767, %v1760
    %v1950 = vpack.c.b16 %v1768, %v1761
    %v1951 = vpack.c.b16 %v1769, %v1762
    %v1952 = vpack.c.b16 %v1770, %v1763
    %v1953 = vpack.c.b16 %v1778, %v1771
    %v1954 = vpack.c.b16 %v1779, %v1772
    %v1955 = vpack.c.b16 %v1780, %v1773
    %v1956 = vpack.c.b16 %v1781, %v1774
    %v1957 = vpack.c.b16 %v1782, %v1775
    %v1958 = vpack.c.b16 %v1783, %v1776
    %v1959 = vpack.c.b16 %v1784, %v1777
    %v1960 = vpack.c.b16 %v1792, %v1785
    %v1961 = vpack.c.b16 %v1793, %v1786
    %v1962 = vpack.c.b16 %v1794, %v1787
    %v1963 = vpack.c.b16 %v1795, %v1788
    %v1964 = vpack.c.b16 %v1796, %v1789
    %v1965 = vpack.c.b16 %v1797, %v1790
    %v1966 = vpack.c.b16 %v1798, %v1791
    %v1967 = vpack.c.b16 %v1806, %v1799
    %v1968 = vpack.c.b16 %v1807, %v1800
    %v1969 = vpack.c.b16 %v1808, %v1801
    %v1970 = vpack.c.b16 %v1809, %v1802
    %v1971 = vpack.c.b16 %v1810, %v1803
    %v1972 = vpack.c.b16 %v1811, %v1804
    %v1973 = vpack.c.b16 %v1812, %v1805
    %v1974 = vpack.c.b16 %v1820, %v1813
    %v1975 = vpack.c.b16 %v1821, %v1814
    %v1976 = vpack.c.b16 %v1822, %v1815
    %v1977 = vpack.c.b16 %v1823, %v1816
    %v1978 = vpack.c.b16 %v1824, %v1817
    %v1979 = vpack.c.b16 %v1825, %v1818
    %v1980 = vpack.c.b16 %v1826, %v1819
    %v1981 = vpack.c.b16 %v1834, %v1827
    %v1982 = vpack.c.b16 %v1835, %v1828
    %v1983 = vpack.c.b16 %v1836, %v1829
    %v1984 = vpack.c.b16 %v1837, %v1830
    %v1985 = vpack.c.b16 %v1838, %v1831
    %v1986 = vpack.c.b16 %v1839, %v1832
    %v1987 = vpack.c.b16 %v1840, %v1833
    %v1988 = vpack.c.b16 %v1848, %v1841
    %v1989 = vpack.c.b16 %v1849, %v1842
    %v1990 = vpack.c.b16 %v1850, %v1843
    %v1991 = vpack.c.b16 %v1851, %v1844
    %v1992 = vpack.c.b16 %v1852, %v1845
    %v1993 = vpack.c.b16 %v1853, %v1846
    %v1994 = vpack.c.b16 %v1854, %v1847
    %v1995 = vpack.c.b16 %v1862, %v1855
    %v1996 = vpack.c.b16 %v1863, %v1856
    %v1997 = vpack.c.b16 %v1864, %v1857
    %v1998 = vpack.c.b16 %v1865, %v1858
    %v1999 = vpack.c.b16 %v1866, %v1859
    %v2000 = vpack.c.b16 %v1867, %v1860
    %v2001 = vpack.c.b16 %v1868, %v1861
    %v2002 = vpack.c.b16 %v1876, %v1869
    %v2003 = vpack.c.b16 %v1877, %v1870
    %v2004 = vpack.c.b16 %v1878, %v1871
    %v2005 = vpack.c.b16 %v1879, %v1872
    %v2006 = vpack.c.b16 %v1880, %v1873
    %v2007 = vpack.c.b16 %v1881, %v1874
    %v2008 = vpack.c.b16 %v1882, %v1875
    %v2009 = vpack.c.b16 %v1890, %v1883
    %v2010 = vpack.c.b16 %v1891, %v1884
    %v2011 = vpack.c.b16 %v1892, %v1885
    %v2012 = vpack.c.b16 %v1893, %v1886
    %v2013 = vpack.c.b16 %v1894, %v1887
    %v2014 = vpack.c.b16 %v1895, %v1888
    %v2015 = vpack.c.b16 %v1896, %v1889
    %v2016 = vpack.c.b16 %v1904, %v1897
    %v2017 = vpack.c.b16 %v1905, %v1898
    %v2018 = vpack.c.b16 %v1906, %v1899
    %v2019 = vpack.c.b16 %v1907, %v1900
    %v2020 = vpack.c.b16 %v1908, %v1901
    %v2021 = vpack.c.b16 %v1909, %v1902
    %v2022 = vpack.c.b16 %v1910, %v1903
    %2135 = vmatpush.bf16.msra.mxu0 %v1960
    %2136 = vmatpush.bf16.msra.mxu0 %v1953
    %2137 = vmatpush.bf16.msra.mxu0 %v1946
    %2138 = vmatpush.bf16.msra.mxu0 %v1939
    %2139 = vmatpush.bf16.msra.mxu0 %v1932
    %2140 = vmatpush.bf16.msra.mxu0 %v1925
    %2141 = vmatpush.bf16.msra.mxu0 %v1918
    %2142 = vmatpush.bf16.msra.mxu0 %v1911
    %2143 = vmatmul.bf16.gmra.mxu0 %v1410
    %v2144 = vpop.f32.mrf.mxu0
    %v2145 = vadd.f32 %v1545, %v2144
    %v2146 = vpop.f32.mrf.mxu0
    %2147 = vdwg.mxu0
    %2148 = vmatpush.bf16.msra.mxu0 %v2016
    %2149 = vmatpush.bf16.msra.mxu0 %v2009
    %2150 = vmatpush.bf16.msra.mxu0 %v2002
    %2151 = vmatpush.bf16.msra.mxu0 %v1995
    %2152 = vmatpush.bf16.msra.mxu0 %v1988
    %2153 = vmatpush.bf16.msra.mxu0 %v1981
    %2154 = vmatpush.bf16.msra.mxu0 %v1974
    %2155 = vmatpush.bf16.msra.mxu0 %v1967
    %2156 = vmatmul.bf16.gmra.mxu0 %v1411
    %v2157 = vpop.f32.mrf.mxu0
    %v2158 = vadd.f32 %v2145, %v2157
    %v2159 = vpop.f32.mrf.mxu0
    %2160 = vdwg.mxu0
    %2161 = vmatpush.bf16.msra.mxu0 %v1961
    %2162 = vmatpush.bf16.msra.mxu0 %v1954
    %2163 = vmatpush.bf16.msra.mxu0 %v1947
    %2164 = vmatpush.bf16.msra.mxu0 %v1940
    %2165 = vmatpush.bf16.msra.mxu0 %v1933
    %2166 = vmatpush.bf16.msra.mxu0 %v1926
    %2167 = vmatpush.bf16.msra.mxu0 %v1919
    %2168 = vmatpush.bf16.msra.mxu0 %v1912
    %2169 = vmatmul.bf16.gmra.mxu0 %v1410
    %v2170 = vpop.f32.mrf.mxu0
    %v2171 = vadd.f32 %v1546, %v2170
    %v2172 = vpop.f32.mrf.mxu0
    %2173 = vdwg.mxu0
    %2174 = vmatpush.bf16.msra.mxu0 %v2017
    %2175 = vmatpush.bf16.msra.mxu0 %v2010
    %2176 = vmatpush.bf16.msra.mxu0 %v2003
    %2177 = vmatpush.bf16.msra.mxu0 %v1996
    %2178 = vmatpush.bf16.msra.mxu0 %v1989
    %2179 = vmatpush.bf16.msra.mxu0 %v1982
    %2180 = vmatpush.bf16.msra.mxu0 %v1975
    %2181 = vmatpush.bf16.msra.mxu0 %v1968
    %2182 = vmatmul.bf16.gmra.mxu0 %v1411
    %v2183 = vpop.f32.mrf.mxu0
    %v2184 = vadd.f32 %v2171, %v2183
    %v2185 = vpop.f32.mrf.mxu0
    %2186 = vdwg.mxu0
    %2187 = vmatpush.bf16.msra.mxu0 %v1962
    %2188 = vmatpush.bf16.msra.mxu0 %v1955
    %2189 = vmatpush.bf16.msra.mxu0 %v1948
    %2190 = vmatpush.bf16.msra.mxu0 %v1941
    %2191 = vmatpush.bf16.msra.mxu0 %v1934
    %2192 = vmatpush.bf16.msra.mxu0 %v1927
    %2193 = vmatpush.bf16.msra.mxu0 %v1920
    %2194 = vmatpush.bf16.msra.mxu0 %v1913
    %2195 = vmatmul.bf16.gmra.mxu0 %v1410
    %v2196 = vpop.f32.mrf.mxu0
    %v2197 = vadd.f32 %v1547, %v2196
    %v2198 = vpop.f32.mrf.mxu0
    %2199 = vdwg.mxu0
    %2200 = vmatpush.bf16.msra.mxu0 %v2018
    %2201 = vmatpush.bf16.msra.mxu0 %v2011
    %2202 = vmatpush.bf16.msra.mxu0 %v2004
    %2203 = vmatpush.bf16.msra.mxu0 %v1997
    %2204 = vmatpush.bf16.msra.mxu0 %v1990
    %2205 = vmatpush.bf16.msra.mxu0 %v1983
    %2206 = vmatpush.bf16.msra.mxu0 %v1976
    %2207 = vmatpush.bf16.msra.mxu0 %v1969
    %2208 = vmatmul.bf16.gmra.mxu0 %v1411
    %v2209 = vpop.f32.mrf.mxu0
    %v2210 = vadd.f32 %v2197, %v2209
    %v2211 = vpop.f32.mrf.mxu0
    %2212 = vdwg.mxu0
    %2213 = vmatpush.bf16.msra.mxu0 %v1963
    %2214 = vmatpush.bf16.msra.mxu0 %v1956
    %2215 = vmatpush.bf16.msra.mxu0 %v1949
    %2216 = vmatpush.bf16.msra.mxu0 %v1942
    %2217 = vmatpush.bf16.msra.mxu0 %v1935
    %2218 = vmatpush.bf16.msra.mxu0 %v1928
    %2219 = vmatpush.bf16.msra.mxu0 %v1921
    %2220 = vmatpush.bf16.msra.mxu0 %v1914
    %2221 = vmatmul.bf16.gmra.mxu0 %v1410
    %v2222 = vpop.f32.mrf.mxu0
    %v2223 = vadd.f32 %v1548, %v2222
    %v2224 = vpop.f32.mrf.mxu0
    %2225 = vdwg.mxu0
    %2226 = vmatpush.bf16.msra.mxu0 %v2019
    %2227 = vmatpush.bf16.msra.mxu0 %v2012
    %2228 = vmatpush.bf16.msra.mxu0 %v2005
    %2229 = vmatpush.bf16.msra.mxu0 %v1998
    %2230 = vmatpush.bf16.msra.mxu0 %v1991
    %2231 = vmatpush.bf16.msra.mxu0 %v1984
    %2232 = vmatpush.bf16.msra.mxu0 %v1977
    %2233 = vmatpush.bf16.msra.mxu0 %v1970
    %2234 = vmatmul.bf16.gmra.mxu0 %v1411
    %v2235 = vpop.f32.mrf.mxu0
    %v2236 = vadd.f32 %v2223, %v2235
    %v2237 = vpop.f32.mrf.mxu0
    %2238 = vdwg.mxu0
    %2239 = vmatpush.bf16.msra.mxu0 %v1964
    %2240 = vmatpush.bf16.msra.mxu0 %v1957
    %2241 = vmatpush.bf16.msra.mxu0 %v1950
    %2242 = vmatpush.bf16.msra.mxu0 %v1943
    %2243 = vmatpush.bf16.msra.mxu0 %v1936
    %2244 = vmatpush.bf16.msra.mxu0 %v1929
    %2245 = vmatpush.bf16.msra.mxu0 %v1922
    %2246 = vmatpush.bf16.msra.mxu0 %v1915
    %2247 = vmatmul.bf16.gmra.mxu0 %v1410
    %v2248 = vpop.f32.mrf.mxu0
    %v2249 = vadd.f32 %v1549, %v2248
    %v2250 = vpop.f32.mrf.mxu0
    %2251 = vdwg.mxu0
    %2252 = vmatpush.bf16.msra.mxu0 %v2020
    %2253 = vmatpush.bf16.msra.mxu0 %v2013
    %2254 = vmatpush.bf16.msra.mxu0 %v2006
    %2255 = vmatpush.bf16.msra.mxu0 %v1999
    %2256 = vmatpush.bf16.msra.mxu0 %v1992
    %2257 = vmatpush.bf16.msra.mxu0 %v1985
    %2258 = vmatpush.bf16.msra.mxu0 %v1978
    %2259 = vmatpush.bf16.msra.mxu0 %v1971
    %2260 = vmatmul.bf16.gmra.mxu0 %v1411
    %v2261 = vpop.f32.mrf.mxu0
    %v2262 = vadd.f32 %v2249, %v2261
    %v2263 = vpop.f32.mrf.mxu0
    %2264 = vdwg.mxu0
    %2265 = vmatpush.bf16.msra.mxu0 %v1965
    %2266 = vmatpush.bf16.msra.mxu0 %v1958
    %2267 = vmatpush.bf16.msra.mxu0 %v1951
    %2268 = vmatpush.bf16.msra.mxu0 %v1944
    %2269 = vmatpush.bf16.msra.mxu0 %v1937
    %2270 = vmatpush.bf16.msra.mxu0 %v1930
    %2271 = vmatpush.bf16.msra.mxu0 %v1923
    %2272 = vmatpush.bf16.msra.mxu0 %v1916
    %2273 = vmatmul.bf16.gmra.mxu0 %v1410
    %v2274 = vpop.f32.mrf.mxu0
    %v2275 = vadd.f32 %v1550, %v2274
    %v2276 = vpop.f32.mrf.mxu0
    %2277 = vdwg.mxu0
    %2278 = vmatpush.bf16.msra.mxu0 %v2021
    %2279 = vmatpush.bf16.msra.mxu0 %v2014
    %2280 = vmatpush.bf16.msra.mxu0 %v2007
    %2281 = vmatpush.bf16.msra.mxu0 %v2000
    %2282 = vmatpush.bf16.msra.mxu0 %v1993
    %2283 = vmatpush.bf16.msra.mxu0 %v1986
    %2284 = vmatpush.bf16.msra.mxu0 %v1979
    %2285 = vmatpush.bf16.msra.mxu0 %v1972
    %2286 = vmatmul.bf16.gmra.mxu0 %v1411
    %v2287 = vpop.f32.mrf.mxu0
    %v2288 = vadd.f32 %v2275, %v2287
    %v2289 = vpop.f32.mrf.mxu0
    %2290 = vdwg.mxu0
    %2291 = vmatpush.bf16.msra.mxu0 %v1966
    %2292 = vmatpush.bf16.msra.mxu0 %v1959
    %2293 = vmatpush.bf16.msra.mxu0 %v1952
    %2294 = vmatpush.bf16.msra.mxu0 %v1945
    %2295 = vmatpush.bf16.msra.mxu0 %v1938
    %2296 = vmatpush.bf16.msra.mxu0 %v1931
    %2297 = vmatpush.bf16.msra.mxu0 %v1924
    %2298 = vmatpush.bf16.msra.mxu0 %v1917
    %2299 = vmatmul.bf16.gmra.mxu0 %v1410
    %v2300 = vpop.f32.mrf.mxu0
    %v2301 = vadd.f32 %v1551, %v2300
    %v2302 = vpop.f32.mrf.mxu0
    %2303 = vdwg.mxu0
    %2304 = vmatpush.bf16.msra.mxu0 %v2022
    %2305 = vmatpush.bf16.msra.mxu0 %v2015
    %2306 = vmatpush.bf16.msra.mxu0 %v2008
    %2307 = vmatpush.bf16.msra.mxu0 %v2001
    %2308 = vmatpush.bf16.msra.mxu0 %v1994
    %2309 = vmatpush.bf16.msra.mxu0 %v1987
    %2310 = vmatpush.bf16.msra.mxu0 %v1980
    %2311 = vmatpush.bf16.msra.mxu0 %v1973
    %2312 = vmatmul.bf16.gmra.mxu0 %v1411
    %v2313 = vpop.f32.mrf.mxu0
    %v2314 = vadd.f32 %v2301, %v2313
    %v2315 = vpop.f32.mrf.mxu0
    %2316 = vdwg.mxu0
    %v2317 = vmax.f32 %v2158, 0.0
    %v2318 = vmax.f32 %v2184, 0.0
    %v2319 = vmax.f32 %v2210, 0.0
    %v2320 = vmax.f32 %v2236, 0.0
    %v2321 = vmax.f32 %v2262, 0.0
    %v2322 = vmax.f32 %v2288, 0.0
    %v2323 = vmax.f32 %v2314, 0.0
    %2324 = vst [vmem:[#allocation2] sm:$0xff] %v2317
    %2325 = vst [vmem:[#allocation2 + $0x8] sm:$0xff] %v2318
    %2326 = vst [vmem:[#allocation2 + $0x10] sm:$0xff] %v2319
    %2327 = vst [vmem:[#allocation2 + $0x18] sm:$0xff] %v2320
    %2328 = vst [vmem:[#allocation2 + $0x20] sm:$0xff] %v2321
    %2329 = vst [vmem:[#allocation2 + $0x28] sm:$0xff] %v2322
    %2330 = vst.msk [vmem:[#allocation2 + $0x30] sm:$0xff] %vm651, %v2323
    // Predicated region
    $region50: #{tpu_custom_call.1} parent=1 // pred_check
      _
    $region51: #{tpu_custom_call.1} parent=1 // pred_check_branch
      %2332 = sbr.rel (0) target = $region53
    $region52: #{tpu_custom_call.1} parent=1 // pred_region
      %2334 = vsyncadd [#allocation3], 0
      %s2336 = sshll.u32 [#allocation2], 4
      %s2337 = int_to_ptr.vmem [resolvable:$true] %s2336
      %s2338 = sshll.u32 %s12, 4
      %s2339 = int_to_ptr.hbm [resolvable:$true] %s2338
      %2341 = dma.vmem_to_hbm [thread:$0]  %s2337, 896, %s2339, [#allocation3]
    $region53: #{tpu_custom_call.1} parent=1 // pred_fallthru
      _
    // Predicated region
    $region54: #{tpu_custom_call.1} parent=1 // pred_check
      _
    $region55: #{tpu_custom_call.1} parent=1 // pred_check_branch
      %2343 = sbr.rel (0) target = $region57
    $region56: #{tpu_custom_call.1} parent=1 // pred_region
      %2345 = dma.done [#allocation3], 896
    $region57: #{tpu_custom_call.1} parent=1 // pred_fallthru
      _
    %2346 = vsyncpa [#allocation3], 1

</llo_original>
